<compile_context>
chip_gen: v7x
topology: tpu7x:2x2x1
jax: 0.10.0
libtpu: 0.0.40
codegen_flags: <defaults>
</compile_context>

<pallas_src>
import math

import jax
import jax.numpy as jnp
from jax import lax
from jax.experimental import pallas as pl
from jax.experimental.pallas import tpu as pltpu


def _make_attention_kernel(num_heads, head_dim, hidden):
    H, nh, d = hidden, num_heads, head_dim

    def kernel(x_ref, wqkv_ref, bqkv_ref, out_ref):
        # x_ref:    (1, S, H)   current batch row (activation dtype)
        # wqkv_ref: (H, 3H)     fused [Wq*scale | Wk | Wv] (activation dtype)
        # bqkv_ref: (1, 3H)     fused [bq*scale | bk | bv] (f32)
        # out_ref:  (1, S, H)   heads concatenated along the last axis
        x = x_ref[0]                                     # (S, H)
        S = x.shape[0]
        in_dtype = x.dtype

        # Fused Q/K/V projection: one well-filled MXU matmul, f32 accumulation.
        qkv = jnp.dot(x, wqkv_ref[...],
                      preferred_element_type=jnp.float32)          # (S, 3H) f32
        qkv = qkv + bqkv_ref[...].astype(jnp.float32)

        # Split Q/K/V and fold heads into a batch dimension: (S, nh, d).
        # (q already carries the 1/sqrt(d) scale, folded into Wq on the host.)
        q = qkv[:, 0 * H:1 * H].astype(in_dtype).reshape(S, nh, d)
        k = qkv[:, 1 * H:2 * H].astype(in_dtype).reshape(S, nh, d)
        v = qkv[:, 2 * H:3 * H].astype(in_dtype).reshape(S, nh, d)

        # Batched QK^T: one batched dot_general (contiguous MXU pushes) instead
        # of nh tiny per-head matmuls.
        scores = jnp.einsum("qhd,khd->hqk", q, k,
                            preferred_element_type=jnp.float32)    # (nh, S, S)

        # Numerically-stable *exact* softmax, in f32 (VPU + EUP).
        scores = scores - jnp.max(scores, axis=-1, keepdims=True)
        p = jnp.exp(scores)
        p = p / jnp.sum(p, axis=-1, keepdims=True)

        # (Dropout is identity in eval mode.)

        # Batched PV; "->qhd" comes back head-contiguous along the last axis,
        # so one reshape yields the lane-dense (S, H) output block directly.
        ctx = jnp.einsum("hqk,khd->qhd", p.astype(in_dtype), v,
                         preferred_element_type=jnp.float32)       # (S, nh, d)
        out_ref[0] = ctx.reshape(S, H).astype(out_ref.dtype)

    return kernel


def vgnet_self_attention(x, wq, bq, wk, bk, wv, bv, num_heads):
    """x: (B, S, H); w*: (H, H) in [in, out] layout; b*: (H,). Returns (B, S, H)."""
    B, S, H = x.shape
    d = H // num_heads
    scale = 1.0 / math.sqrt(d)

    # Fold the 1/sqrt(d) attention scale into the query projection in f32
    # (weights AND bias), fuse Q/K/V into one (H, 3H) matrix, then cast the
    # fused weight to the activation dtype so the MXU sees native operands.
    w_qkv = jnp.concatenate(
        [wq.astype(jnp.float32) * scale,
         wk.astype(jnp.float32),
         wv.astype(jnp.float32)], axis=1).astype(x.dtype)               # (H, 3H)
    b_qkv = jnp.concatenate(
        [bq.astype(jnp.float32) * scale,
         bk.astype(jnp.float32),
         bv.astype(jnp.float32)], axis=0)[None, :].astype(jnp.float32)  # (1, 3H)

    itemsize = jnp.dtype(x.dtype).itemsize
    cost = pl.CostEstimate(
        flops=B * (2 * S * H * (3 * H) + 4 * num_heads * S * S * d),
        transcendentals=B * num_heads * S * S,
        bytes_accessed=(2 * B * S * H * itemsize        # x in, out
                        + H * 3 * H * itemsize          # W_qkv
                        + 3 * H * 4))                   # b_qkv (f32)

    out = pl.pallas_call(
        _make_attention_kernel(num_heads, d, H),
        out_shape=jax.ShapeDtypeStruct((B, S, H), x.dtype),
        grid_spec=pl.GridSpec(
            grid=(B,),
            in_specs=[
                pl.BlockSpec((1, S, H), lambda b: (b, 0, 0)),       # x
                pl.BlockSpec((H, 3 * H), lambda b: (0, 0)),         # W_qkv
                pl.BlockSpec((1, 3 * H), lambda b: (0, 0)),         # b_qkv
            ],
            out_specs=pl.BlockSpec((1, S, H), lambda b: (b, 0, 0)),
        ),
        compiler_params=pltpu.CompilerParams(
            dimension_semantics=("parallel",),
            vmem_limit_bytes=32 * 1024 * 1024),
        cost_estimate=cost,
    )(x, w_qkv, b_qkv)

    return out


def _reference(x, wq, bq, wk, bk, wv, bv, num_heads):
    """Pure-JAX reference mirroring the PyTorch forward (eval mode)."""
    B, S, H = x.shape
    d = H // num_heads
    hp = lax.Precision.HIGHEST

    def proj(w, b):
        y = jnp.einsum("bsh,hd->bsd", x, w, precision=hp) + b        # (B, S, H)
        return jnp.transpose(y.reshape(B, S, num_heads, d), (0, 2, 1, 3))

    q, k, v = proj(wq, bq), proj(wk, bk), proj(wv, bv)               # (B, nh, S, d)
    scores = jnp.einsum("bhqd,bhkd->bhqk", q, k, precision=hp) / math.sqrt(d)
    p = jax.nn.softmax(scores, axis=-1)
    ctx = jnp.einsum("bhqk,bhkd->bhqd", p, v, precision=hp)
    return jnp.transpose(ctx, (0, 2, 1, 3)).reshape(B, S, H)


if __name__ == "__main__":
    # Small shapes consistent with the module: hidden=32, heads=4, seq=8, batch=2
    B, S, H = 2, 8, 32
    num_heads = 4

    key = jax.random.PRNGKey(0)
    kx, kq, kbq, kk, kbk, kv, kbv = jax.random.split(key, 7)

    x = jax.random.normal(kx, (B, S, H), dtype=jnp.float32)

    # nn.Linear(hidden, hidden)-style init (deterministic, uniform(-bound, bound))
    bound = 1.0 / math.sqrt(H)
    wq = jax.random.uniform(kq, (H, H), minval=-bound, maxval=bound, dtype=jnp.float32)
    bq = jax.random.uniform(kbq, (H,), minval=-bound, maxval=bound, dtype=jnp.float32)
    wk = jax.random.uniform(kk, (H, H), minval=-bound, maxval=bound, dtype=jnp.float32)
    bk = jax.random.uniform(kbk, (H,), minval=-bound, maxval=bound, dtype=jnp.float32)
    wv = jax.random.uniform(kv, (H, H), minval=-bound, maxval=bound, dtype=jnp.float32)
    bv = jax.random.uniform(kbv, (H,), minval=-bound, maxval=bound, dtype=jnp.float32)

    out = vgnet_self_attention(x, wq, bq, wk, bk, wv, bv, num_heads)
    out = jax.block_until_ready(out)

    ref = _reference(x, wq, bq, wk, bk, wv, bv, num_heads)
    assert out.shape == (B, S, H)
    max_err = float(jnp.max(jnp.abs(out - ref)))
    assert jnp.allclose(out, ref, atol=2e-3, rtol=2e-3), (
        f"mismatch vs reference (max abs err = {max_err:.3e})")

    print("KERNEL_OK")
</pallas_src>

<mosaic_0001>
module attributes {stable_mosaic.version = 11 : i64} {
  func.func @kernel(%arg0: i32, %arg1: memref<1x8x32xf32, #tpu.memory_space<vmem>>, %arg2: memref<32x96xf32, #tpu.memory_space<vmem>>, %arg3: memref<1x96xf32, #tpu.memory_space<vmem>>, %arg4: memref<1x8x32xf32, #tpu.memory_space<vmem>>) attributes {dimension_semantics = [#tpu.dimension_semantics<parallel>], iteration_bounds = array<i64: 2>, scalar_prefetch = 0 : i64, scratch_operands = 0 : i64, tpu.core_type = #tpu.core_type<tc>, window_params = [{transform_indices = @transform_0, window_bounds = array<i64: 1, 8, 32>}, {pipeline_mode = #tpu.pipeline_mode<synchronous>, transform_indices = @transform_1, window_bounds = array<i64: 32, 96>}, {pipeline_mode = #tpu.pipeline_mode<synchronous>, transform_indices = @transform_2, window_bounds = array<i64: 1, 96>}, {transform_indices = @transform_3, window_bounds = array<i64: 1, 8, 32>}]} {
    %c0 = arith.constant 0 : index
    %c0_0 = arith.constant 0 : index
    %c0_1 = arith.constant 0 : index
    %0 = vector.load %arg1[%c0, %c0_0, %c0_1] : memref<1x8x32xf32, #tpu.memory_space<vmem>>, vector<1x8x32xf32>
    %1 = vector.shape_cast %0 : vector<1x8x32xf32> to vector<8x32xf32>
    %c0_2 = arith.constant 0 : index
    %c0_3 = arith.constant 0 : index
    %2 = vector.load %arg2[%c0_2, %c0_3] : memref<32x96xf32, #tpu.memory_space<vmem>>, vector<32x96xf32>
    %cst = arith.constant dense<0.000000e+00> : vector<8x96xf32>
    %3 = tpu.matmul %1, %2, %cst {dimension_numbers = #tpu.dot_dimension_numbers<[1], [0], [0], [1], [0, 0, 1, 1], [], []>} : vector<8x32xf32>, vector<32x96xf32>, vector<8x96xf32> -> vector<8x96xf32>
    %c0_4 = arith.constant 0 : index
    %c0_5 = arith.constant 0 : index
    %4 = vector.load %arg3[%c0_4, %c0_5] : memref<1x96xf32, #tpu.memory_space<vmem>>, vector<1x96xf32>
    %5 = vector.broadcast %4 : vector<1x96xf32> to vector<8x96xf32>
    %6 = arith.addf %3, %5 : vector<8x96xf32>
    %7 = vector.extract_strided_slice %6 {offsets = [0, 0], sizes = [8, 32], strides = [1, 1]} : vector<8x96xf32> to vector<8x32xf32>
    %8 = vector.shape_cast %7 : vector<8x32xf32> to vector<8x4x8xf32>
    %9 = vector.extract_strided_slice %6 {offsets = [0, 32], sizes = [8, 32], strides = [1, 1]} : vector<8x96xf32> to vector<8x32xf32>
    %10 = vector.shape_cast %9 : vector<8x32xf32> to vector<8x4x8xf32>
    %11 = vector.extract_strided_slice %6 {offsets = [0, 64], sizes = [8, 32], strides = [1, 1]} : vector<8x96xf32> to vector<8x32xf32>
    %12 = vector.shape_cast %11 : vector<8x32xf32> to vector<8x4x8xf32>
    "tpu.trace_start"() <{level = 10 : i32, message = "qhd,khd->hqk"}> : () -> ()
    %cst_6 = arith.constant dense<0.000000e+00> : vector<4x8x8xf32>
    %13 = tpu.matmul %8, %10, %cst_6 {dimension_numbers = #tpu.dot_dimension_numbers<[2], [2], [0], [0], [0, 1, 0, 0, 1, 0], [1], [1]>} : vector<8x4x8xf32>, vector<8x4x8xf32>, vector<4x8x8xf32> -> vector<4x8x8xf32>
    "tpu.trace_stop"() : () -> ()
    %cst_7 = arith.constant dense<0xFF800000> : vector<4x8xf32>
    %14 = vector.multi_reduction <maximumf>, %13, %cst_7 [2] : vector<4x8x8xf32> to vector<4x8xf32>
    %15 = vector.shape_cast %14 : vector<4x8xf32> to vector<4x8x1xf32>
    %16 = vector.broadcast %15 : vector<4x8x1xf32> to vector<4x8x8xf32>
    %17 = arith.subf %13, %16 : vector<4x8x8xf32>
    %18 = math.exp %17 : vector<4x8x8xf32>
    %cst_8 = arith.constant dense<0.000000e+00> : vector<4x8xf32>
    %19 = vector.multi_reduction <add>, %18, %cst_8 [2] : vector<4x8x8xf32> to vector<4x8xf32>
    %20 = vector.shape_cast %19 : vector<4x8xf32> to vector<4x8x1xf32>
    %21 = vector.broadcast %20 : vector<4x8x1xf32> to vector<4x8x8xf32>
    %22 = arith.divf %18, %21 : vector<4x8x8xf32>
    "tpu.trace_start"() <{level = 10 : i32, message = "hqk,khd->qhd"}> : () -> ()
    %cst_9 = arith.constant dense<0.000000e+00> : vector<4x8x8xf32>
    %23 = tpu.matmul %12, %22, %cst_9 {dimension_numbers = #tpu.dot_dimension_numbers<[0], [2], [2], [1], [0, 1, 0, 2, 1, 1], [1], [0]>} : vector<8x4x8xf32>, vector<4x8x8xf32>, vector<4x8x8xf32> -> vector<4x8x8xf32>
    %24 = tpu.transpose %23, [2, 0, 1] : vector<4x8x8xf32> -> vector<8x4x8xf32>
    "tpu.trace_stop"() : () -> ()
    %25 = vector.shape_cast %24 : vector<8x4x8xf32> to vector<8x32xf32>
    %c0_10 = arith.constant 0 : index
    %c0_11 = arith.constant 0 : index
    %c0_12 = arith.constant 0 : index
    %26 = vector.load %arg4[%c0_10, %c0_11, %c0_12] : memref<1x8x32xf32, #tpu.memory_space<vmem>>, vector<1x8x32xf32>
    %27 = vector.shape_cast %26 : vector<1x8x32xf32> to vector<8x32xf32>
    %28 = vector.shape_cast %25 : vector<8x32xf32> to vector<1x8x32xf32>
    tpu.vector_store %arg4[%c0_10, %c0_11, %c0_12], %28 {strides = array<i32>} : memref<1x8x32xf32, #tpu.memory_space<vmem>>, vector<1x8x32xf32>,
    return
  }
  func.func @transform_0(%arg0: i32) -> (i32, i32, i32) {
    %c0_i32 = arith.constant 0 : i32
    %c0_i32_0 = arith.constant 0 : i32
    %c0_i32_1 = arith.constant 0 : i32
    return %arg0, %c0_i32, %c0_i32_0 : i32, i32, i32
  }
  func.func @transform_1(%arg0: i32) -> (i32, i32) {
    %c0_i32 = arith.constant 0 : i32
    %c0_i32_0 = arith.constant 0 : i32
    %c0_i32_1 = arith.constant 0 : i32
    return %c0_i32, %c0_i32_0 : i32, i32
  }
  func.func @transform_2(%arg0: i32) -> (i32, i32) {
    %c0_i32 = arith.constant 0 : i32
    %c0_i32_0 = arith.constant 0 : i32
    %c0_i32_1 = arith.constant 0 : i32
    return %c0_i32, %c0_i32_0 : i32, i32
  }
  func.func @transform_3(%arg0: i32) -> (i32, i32, i32) {
    %c0_i32 = arith.constant 0 : i32
    %c0_i32_0 = arith.constant 0 : i32
    %c0_i32_1 = arith.constant 0 : i32
    return %arg0, %c0_i32, %c0_i32_0 : i32, i32, i32
  }
}

</mosaic_0001>

<llo_original>
// kernel: tpu_custom_call.1
$region0: #{tpu_custom_call.1}
  #allocation0 [shape = 'u32[]', space=smem, size = 0x4, offset = 0x4, fixed_abs, tag = 'smem constant byte address 0x4 - core index']
  #allocation1 [shape = 'u32[144,128]{1,0:T(1,128)}', space=vmem, size = 0x12000, scoped, tag = 'internal scratch']
  %s0 = inlined_call_operand.hbm [shape: f32[2,8,32], index: 0, kind: input, shape index: {}]
  %s1 = inlined_call_operand.hbm [shape: f32[32,96], index: 1, kind: input, shape index: {}]
  %s2 = inlined_call_operand.vmem [shape: f32[1,96], index: 2, kind: input, shape index: {}]
  %s3 = inlined_call_operand.hbm [shape: f32[2,8,32], index: 3, kind: output, shape index: {}]
  %s4 = sld [smem:[#allocation0]]
  $region53: #{tpu_custom_call.1} parent=0
    _
  %s6 = ssub.s32 1, %s4
  %s7 = scalar_select 0, %s6, %s4
  $region1: #{tpu_custom_call.1} parent=0
    #allocation2 [shape = 'u8[8192]{0}', space=vmem, size = 0x2000, scoped, tag = 'input window, operand 0']
    #allocation3 [shape = 's32[2]{0}', space=sflag, size = 0x8, scoped, tag = 'scoped memory for tpu_custom_call.1']
    #allocation4 [shape = 's32[2]{0}', space=sflag, size = 0x8, scoped, tag = 'scoped memory for tpu_custom_call.1']
    #allocation5 [shape = 'u8[16384]{0}', space=vmem, size = 0x4000, scoped, tag = 'input window, operand 1, single buffered']
    #allocation6 [shape = 's32[1]{0}', space=sflag, size = 0x4, scoped, tag = 'scoped memory for tpu_custom_call.1']
    #allocation7 [shape = 'u8[8192]{0}', space=vmem, size = 0x2000, scoped, tag = 'output window, operand 0']
    %8 = vsyncpa [#allocation3], 0
    %s9 = scalar_lea.sflag [#allocation3], 1
    %10 = vsyncpa %s9, 0
    %11 = vsyncpa [#allocation6], 0
    %12 = vsyncpa [#allocation4], 0
    %s13 = scalar_lea.sflag [#allocation4], 1
    %14 = vsyncpa %s13, 0
    loop: start=0, step=1, limit=4
    $region2: #{tpu_custom_call.1} parent=1 // loop_pre_header
      _
    $region3: #{tpu_custom_call.1} parent=1 // loop_header
      %s16 = sphi 0, %s20
      %p17 = scmp.ge.s32.totalorder %s16, 4
      %s26 = sphi 0, %s28
      %s29 = sphi 0, %s26
      %s30 = sphi 0, %s29
      %s46 = sphi 0, %s30
      %s50 = sphi 0, %s50
      %s52 = sphi 0, %s50
      %s53 = sphi 0, %s52
      %s67 = sphi 0, %s53
      %s71 = sphi 0, %s71
      %s73 = sphi 0, %s71
      %s74 = sphi 0, %s73
      %s88 = sphi 0, %s74
      %s94 = sphi 0, %s96
      %s97 = sphi 0, %s94
      %s98 = sphi 0, %s97
      %s114 = sphi 0, %s98
    $region4: #{tpu_custom_call.1} parent=1 // loop_header_branch
      %19 = sbr.rel (%p17) target = $region8
    $region5: #{tpu_custom_call.1} parent=1 // loop_body
      %s21 = ssub.s32 %s16, 1
      %s22 = ssub.s32 %s16, 2
      %s23 = sadd.s32 %s16, 1
      %s24 = ssub.s32 %s16, %s23
      %p25 = scmp.eq.s32.totalorder %s24, 0
      %s27 = sadd.s32 %s26, 1
      %s28 = scalar_select %p25, %s26, %s27
      %p31 = pneg %p25
      %p32 = scmp.eq.s32.totalorder %s16, 1
      %p33 = por %p31, %p32
      %p34 = scmp.ne.s32.totalorder %s26, %s29
      %p35 = scmp.eq.s32.totalorder %s16, 0
      %p36 = por %p34, %p35
      %p37 = scmp.ne.s32.totalorder %s26, %s29
      %p38 = scmp.eq.s32.totalorder %s21, 1
      %p39 = por %p37, %p38
      %p40 = scmp.ne.s32.totalorder %s29, %s30
      %p41 = scmp.eq.s32.totalorder %s21, 0
      %p42 = por %p40, %p41
      %p43 = scmp.ne.s32.totalorder %s29, %s30
      %p44 = scmp.eq.s32.totalorder %s22, 1
      %p45 = por %p43, %p44
      %p47 = scmp.ne.s32.totalorder %s30, %s46
      %p48 = scmp.eq.s32.totalorder %s22, 0
      %p49 = por %p47, %p48
      %s51 = sadd.s32 %s50, 1
      %p54 = scmp.eq.s32.totalorder %s16, 1
      %p55 = scmp.ne.s32.totalorder %s50, %s52
      %p56 = scmp.eq.s32.totalorder %s16, 0
      %p57 = por %p55, %p56
      %p58 = scmp.ne.s32.totalorder %s50, %s52
      %p59 = scmp.eq.s32.totalorder %s21, 1
      %p60 = por %p58, %p59
      %p61 = scmp.ne.s32.totalorder %s52, %s53
      %p62 = scmp.eq.s32.totalorder %s21, 0
      %p63 = por %p61, %p62
      %p64 = scmp.ne.s32.totalorder %s52, %s53
      %p65 = scmp.eq.s32.totalorder %s22, 1
      %p66 = por %p64, %p65
      %p68 = scmp.ne.s32.totalorder %s53, %s67
      %p69 = scmp.eq.s32.totalorder %s22, 0
      %p70 = por %p68, %p69
      %s72 = sadd.s32 %s71, 1
      %p75 = scmp.eq.s32.totalorder %s16, 1
      %p76 = scmp.ne.s32.totalorder %s71, %s73
      %p77 = scmp.eq.s32.totalorder %s16, 0
      %p78 = por %p76, %p77
      %p79 = scmp.ne.s32.totalorder %s71, %s73
      %p80 = scmp.eq.s32.totalorder %s21, 1
      %p81 = por %p79, %p80
      %p82 = scmp.ne.s32.totalorder %s73, %s74
      %p83 = scmp.eq.s32.totalorder %s21, 0
      %p84 = por %p82, %p83
      %p85 = scmp.ne.s32.totalorder %s73, %s74
      %p86 = scmp.eq.s32.totalorder %s22, 1
      %p87 = por %p85, %p86
      %p89 = scmp.ne.s32.totalorder %s74, %s88
      %p90 = scmp.eq.s32.totalorder %s22, 0
      %p91 = por %p89, %p90
      %s92 = ssub.s32 %s16, %s23
      %p93 = scmp.eq.s32.totalorder %s92, 0
      %s95 = sadd.s32 %s94, 1
      %s96 = scalar_select %p93, %s94, %s95
      %p99 = pneg %p93
      %p100 = scmp.eq.s32.totalorder %s16, 1
      %p101 = por %p99, %p100
      %p102 = scmp.ne.s32.totalorder %s94, %s97
      %p103 = scmp.eq.s32.totalorder %s16, 0
      %p104 = por %p102, %p103
      %p105 = scmp.ne.s32.totalorder %s94, %s97
      %p106 = scmp.eq.s32.totalorder %s21, 1
      %p107 = por %p105, %p106
      %p108 = scmp.ne.s32.totalorder %s97, %s98
      %p109 = scmp.eq.s32.totalorder %s21, 0
      %p110 = por %p108, %p109
      %p111 = scmp.ne.s32.totalorder %s97, %s98
      %p112 = scmp.eq.s32.totalorder %s22, 1
      %p113 = por %p111, %p112
      %p115 = scmp.ne.s32.totalorder %s98, %s114
      %p116 = scmp.eq.s32.totalorder %s22, 0
      %p117 = por %p115, %p116
      %p118 = scmp.le.s32.totalorder 1, %s16
      %p119 = scmp.lt.s32.totalorder %s16, 3
      %p120 = pnand %p118, %p119
      %p121 = pneg %p120
      // Predicated region
      $region9: #{tpu_custom_call.1} parent=5 // pred_check
        _
      $region10: #{tpu_custom_call.1} parent=5 // pred_check_branch
        %123 = sbr.rel (%p120) target = $region12
      $region11: #{tpu_custom_call.1} parent=5 // pred_region
        %s124 = ssub.s32 %s16, 1
        // Predicated region
        $region13: #{tpu_custom_call.1} parent=11 // pred_check
          %p125 = pneg %p63
        $region14: #{tpu_custom_call.1} parent=11 // pred_check_branch
          %127 = sbr.rel (%p125) target = $region16
        $region15: #{tpu_custom_call.1} parent=11 // pred_region
          %s129 = ssub.s32 512, 512
          %130 = vsyncadd [#allocation6], %s129
          %s131 = sshll.u32 [#allocation5], 4
          %s132 = int_to_ptr.vmem [resolvable:$true] %s131
          %137 = dma.hbm_to_vmem [thread:$0]  %s1, 512, %s132, [#allocation6], 128, 128, 8
        $region16: #{tpu_custom_call.1} parent=11 // pred_fallthru
          _
        // Predicated region
        $region17: #{tpu_custom_call.1} parent=11 // pred_check
          %p138 = pneg %p84
        $region18: #{tpu_custom_call.1} parent=11 // pred_check_branch
          %140 = sbr.rel (%p138) target = $region20
        $region19: #{tpu_custom_call.1} parent=11 // pred_region
          _
        $region20: #{tpu_custom_call.1} parent=11 // pred_fallthru
          _
      $region12: #{tpu_custom_call.1} parent=5 // pred_fallthru
        _
      %p141 = scmp.lt.s32.totalorder %s16, 2
      // Predicated region
      $region21: #{tpu_custom_call.1} parent=5 // pred_check
        %p142 = pneg %p141
      $region22: #{tpu_custom_call.1} parent=5 // pred_check_branch
        %144 = sbr.rel (%p142) target = $region24
      $region23: #{tpu_custom_call.1} parent=5 // pred_region
        // Predicated region
        $region25: #{tpu_custom_call.1} parent=23 // pred_check
          %p145 = pneg %p36
        $region26: #{tpu_custom_call.1} parent=23 // pred_check_branch
          %147 = sbr.rel (%p145) target = $region28
        $region27: #{tpu_custom_call.1} parent=23 // pred_region
          %s148 = sand.u32 %s26, 1
          %s149 = scalar_lea.sflag [#allocation3], %s148
          %s150 = sand.u32 %s26, 1
          %s151 = smul.addr %s150, 8
          %s152 = scalar_lea.vmem [#allocation2], %s151
          %s154 = ssub.s32 128, 128
          %155 = vsyncadd %s149, %s154
          %s156 = smul.addr %s16, 128
          %s157 = scalar_lea.hbm %s0, %s156
          %s159 = sshll.u32 %s152, 4
          %s160 = int_to_ptr.vmem [resolvable:$true] %s159
          %162 = dma.hbm_to_vmem [thread:$0]  %s157, 128, %s160, %s149
        $region28: #{tpu_custom_call.1} parent=23 // pred_fallthru
          _
      $region24: #{tpu_custom_call.1} parent=5 // pred_fallthru
        _
      %p163 = scmp.le.s32.totalorder 1, %s16
      %p164 = scmp.lt.s32.totalorder %s16, 3
      %p165 = pnand %p163, %p164
      %p166 = pneg %p165
      // Predicated region
      $region29: #{tpu_custom_call.1} parent=5 // pred_check
        _
      $region30: #{tpu_custom_call.1} parent=5 // pred_check_branch
        %168 = sbr.rel (%p165) target = $region32
      $region31: #{tpu_custom_call.1} parent=5 // pred_region
        %s169 = ssub.s32 %s16, 1
        %s170 = sand.u32 %s29, 1
        %s171 = scalar_lea.sflag [#allocation3], %s170
        %s172 = sand.u32 %s29, 1
        %s173 = smul.addr %s172, 8
        %s174 = scalar_lea.vmem [#allocation2], %s173
        // Predicated region
        $region33: #{tpu_custom_call.1} parent=31 // pred_check
          %p175 = pneg %p42
        $region34: #{tpu_custom_call.1} parent=31 // pred_check_branch
          %177 = sbr.rel (%p175) target = $region36
        $region35: #{tpu_custom_call.1} parent=31 // pred_region
          %178 = dma.done %s171, 128
        $region36: #{tpu_custom_call.1} parent=31 // pred_fallthru
          _
        // Predicated region
        $region37: #{tpu_custom_call.1} parent=31 // pred_check
          %p179 = pneg %p63
        $region38: #{tpu_custom_call.1} parent=31 // pred_check_branch
          %181 = sbr.rel (%p179) target = $region40
        $region39: #{tpu_custom_call.1} parent=31 // pred_region
          %182 = dma.done [#allocation6], 512
        $region40: #{tpu_custom_call.1} parent=31 // pred_fallthru
          _
        %s183 = sand.u32 %s29, 1
        %s184 = scalar_lea.sflag [#allocation3], %s183
        %s185 = sand.u32 %s29, 1
        %s186 = smul.addr %s185, 8
        %s187 = scalar_lea.vmem [#allocation2], %s186
        %p188 = pneg %p42
        %p189 = pneg %p39
        %p190 = pneg %p63
        %p191 = pneg %p60
        %p192 = pneg %p84
        %p193 = pneg %p81
        %p194 = pneg %p110
        %p195 = pneg %p107
        %s196 = sand.u32 %s97, 1
        %s197 = scalar_lea.sflag [#allocation4], %s196
        %s198 = sand.u32 %s97, 1
        %s199 = smul.addr %s198, 8
        %s200 = scalar_lea.vmem [#allocation7], %s199
        %v201 = vld [vmem:[%s174] sm:$0xff]
        %v202 = vld [vmem:[#allocation5] sm:$0xff]
        %v203 = vld [vmem:[#allocation5 + $0x8] sm:$0xff]
        %v204 = vld [vmem:[#allocation5 + $0x10] sm:$0xff]
        %v205 = vld [vmem:[#allocation5 + $0x18] sm:$0xff]
        %v206 = vld [vmem:[%s2] sm:$0x1]
        %v208 = vlaneseq
        %v209 = vshrl.u32 %v208, 7
        %v210 = vsub.s32 0, %v209
        %v211 = vrot.slane %v206, %v210
        %vm213 = vcmask 261120
        %v215 = vsel %vm213, %v201, 0
        %217 = vmatprep.subr.mxu0 0.0
        %218 = vmatpush1.msra.mxu0 %v202
        %219 = vmatprep.subr.mxu0 0.0
        %220 = vmatpush1.msra.mxu0 %v203
        %221 = vmatprep.subr.mxu0 0.0
        %222 = vmatpush1.msra.mxu0 %v204
        %223 = vmatprep.subr.mxu0 0.0
        %224 = vmatpush1.msra.mxu0 %v205
        %225 = vmatprep.subr.mxu0 0.0
        %226 = vmatpush1.msra.mxu0 0.0
        %227 = vmatprep.subr.mxu0 0.0
        %228 = vmatpush1.msra.mxu0 0.0
        %229 = vmatprep.subr.mxu0 0.0
        %230 = vmatpush1.msra.mxu0 0.0
        %231 = vmatprep.subr.mxu0 0.0
        %232 = vmatpush1.msra.mxu0 0.0
        %233 = vmatprep.subr.mxu0 0.0
        %234 = vmatpush1.msra.mxu0 0.0
        %235 = vmatprep.subr.mxu0 0.0
        %236 = vmatpush1.msra.mxu0 0.0
        %237 = vmatprep.subr.mxu0 0.0
        %238 = vmatpush1.msra.mxu0 0.0
        %239 = vmatprep.subr.mxu0 0.0
        %240 = vmatpush1.msra.mxu0 0.0
        %241 = vmatprep.subr.mxu0 0.0
        %242 = vmatpush1.msra.mxu0 0.0
        %243 = vmatprep.subr.mxu0 0.0
        %244 = vmatpush1.msra.mxu0 0.0
        %245 = vmatprep.subr.mxu0 0.0
        %246 = vmatpush1.msra.mxu0 0.0
        %247 = vmatprep.subr.mxu0 0.0
        %248 = vmatpush1.msra.mxu0 0.0
        %249 = vmatprep.subr.mxu0 0.0
        %250 = vmatpush1.msra.mxu0 0.0
        %251 = vmatprep.subr.mxu0 0.0
        %252 = vmatpush1.msra.mxu0 0.0
        %253 = vmatprep.subr.mxu0 0.0
        %254 = vmatpush1.msra.mxu0 0.0
        %255 = vmatprep.subr.mxu0 0.0
        %256 = vmatpush1.msra.mxu0 0.0
        %257 = vmatprep.subr.mxu0 0.0
        %258 = vmatpush1.msra.mxu0 0.0
        %259 = vmatprep.subr.mxu0 0.0
        %260 = vmatpush1.msra.mxu0 0.0
        %261 = vmatprep.subr.mxu0 0.0
        %262 = vmatpush1.msra.mxu0 0.0
        %263 = vmatprep.subr.mxu0 0.0
        %264 = vmatpush1.msra.mxu0 0.0
        %265 = vmatprep.subr.mxu0 0.0
        %266 = vmatpush1.msra.mxu0 0.0
        %267 = vmatprep.subr.mxu0 0.0
        %268 = vmatpush1.msra.mxu0 0.0
        %269 = vmatprep.subr.mxu0 0.0
        %270 = vmatpush1.msra.mxu0 0.0
        %271 = vmatprep.subr.mxu0 0.0
        %272 = vmatpush1.msra.mxu0 0.0
        %273 = vmatprep.subr.mxu0 0.0
        %274 = vmatpush1.msra.mxu0 0.0
        %275 = vmatprep.subr.mxu0 0.0
        %276 = vmatpush1.msra.mxu0 0.0
        %277 = vmatprep.subr.mxu0 0.0
        %278 = vmatpush1.msra.mxu0 0.0
        %279 = vmatprep.subr.mxu0 0.0
        %280 = vmatpush1.msra.mxu0 0.0
        %281 = vmatprep.mubr.f32.mxu0 0.0
        %282 = vmatmul.mubr.f32.gmra.mrb[0].mxu0 %v215
        %v283 = vpop.f32.mrb[0].mxu0
        %v284 = vadd.f32 %v211, %v283
        %v285 = vpop.f32.mrb[0].mxu0
        %286 = vdwg.mxu0
        %288 = vrot.lane.b32.xlu0 %v284, 120
        %v289 = vpop.permute.xlu0 %288
        %290 = vrot.lane.b32.xlu0 %v284, 112
        %v291 = vpop.permute.xlu0 %290
        %292 = vrot.lane.b32.xlu0 %v284, 104
        %v293 = vpop.permute.xlu0 %292
        %294 = vrot.lane.b32.xlu0 %v284, 96
        %v295 = vpop.permute.xlu0 %294
        %296 = vrot.lane.b32.xlu0 %v289, 96
        %v297 = vpop.permute.xlu0 %296
        %298 = vrot.lane.b32.xlu0 %v291, 96
        %v299 = vpop.permute.xlu0 %298
        %300 = vrot.lane.b32.xlu0 %v293, 96
        %v301 = vpop.permute.xlu0 %300
        %306 = vxpose.xlu0.b32.start [1/16] %v295, 128
        %307 = vxpose.xlu0.b32.cont [2/16] 0.0, 128
        %308 = vxpose.xlu0.b32.cont [3/16] 0.0, 128
        %309 = vxpose.xlu0.b32.cont [4/16] 0.0, 128
        %310 = vxpose.xlu0.b32.cont [5/16] 0.0, 128
        %311 = vxpose.xlu0.b32.cont [6/16] 0.0, 128
        %312 = vxpose.xlu0.b32.cont [7/16] 0.0, 128
        %313 = vxpose.xlu0.b32.cont [8/16] 0.0, 128
        %314 = vxpose.xlu0.b32.cont [9/16] 0.0, 128
        %315 = vxpose.xlu0.b32.cont [10/16] 0.0, 128
        %316 = vxpose.xlu0.b32.cont [11/16] 0.0, 128
        %317 = vxpose.xlu0.b32.cont [12/16] 0.0, 128
        %318 = vxpose.xlu0.b32.cont [13/16] 0.0, 128
        %319 = vxpose.xlu0.b32.cont [14/16] 0.0, 128
        %320 = vxpose.xlu0.b32.cont [15/16] 0.0, 128
        %321 = vxpose.xlu0.b32.end [16/16] 0.0, 128
        %v322 = vpop.trf.xlu0
        %v323 = vpop.trf.xlu0
        %v324 = vpop.trf.xlu0
        %v325 = vpop.trf.xlu0
        %v326 = vpop.trf.xlu0
        %v327 = vpop.trf.xlu0
        %v328 = vpop.trf.xlu0
        %v329 = vpop.trf.xlu0
        %v330 = vpop.trf.xlu0
        %v331 = vpop.trf.xlu0
        %v332 = vpop.trf.xlu0
        %v333 = vpop.trf.xlu0
        %v334 = vpop.trf.xlu0
        %v335 = vpop.trf.xlu0
        %v336 = vpop.trf.xlu0
        %v337 = vpop.trf.xlu0
        %338 = vxpose.xlu0.b32.start [1/16] %v297, 128
        %339 = vxpose.xlu0.b32.cont [2/16] 0.0, 128
        %340 = vxpose.xlu0.b32.cont [3/16] 0.0, 128
        %341 = vxpose.xlu0.b32.cont [4/16] 0.0, 128
        %342 = vxpose.xlu0.b32.cont [5/16] 0.0, 128
        %343 = vxpose.xlu0.b32.cont [6/16] 0.0, 128
        %344 = vxpose.xlu0.b32.cont [7/16] 0.0, 128
        %345 = vxpose.xlu0.b32.cont [8/16] 0.0, 128
        %346 = vxpose.xlu0.b32.cont [9/16] 0.0, 128
        %347 = vxpose.xlu0.b32.cont [10/16] 0.0, 128
        %348 = vxpose.xlu0.b32.cont [11/16] 0.0, 128
        %349 = vxpose.xlu0.b32.cont [12/16] 0.0, 128
        %350 = vxpose.xlu0.b32.cont [13/16] 0.0, 128
        %351 = vxpose.xlu0.b32.cont [14/16] 0.0, 128
        %352 = vxpose.xlu0.b32.cont [15/16] 0.0, 128
        %353 = vxpose.xlu0.b32.end [16/16] 0.0, 128
        %v354 = vpop.trf.xlu0
        %v355 = vpop.trf.xlu0
        %v356 = vpop.trf.xlu0
        %v357 = vpop.trf.xlu0
        %v358 = vpop.trf.xlu0
        %v359 = vpop.trf.xlu0
        %v360 = vpop.trf.xlu0
        %v361 = vpop.trf.xlu0
        %v362 = vpop.trf.xlu0
        %v363 = vpop.trf.xlu0
        %v364 = vpop.trf.xlu0
        %v365 = vpop.trf.xlu0
        %v366 = vpop.trf.xlu0
        %v367 = vpop.trf.xlu0
        %v368 = vpop.trf.xlu0
        %v369 = vpop.trf.xlu0
        %370 = vxpose.xlu0.b32.start [1/16] %v299, 128
        %371 = vxpose.xlu0.b32.cont [2/16] 0.0, 128
        %372 = vxpose.xlu0.b32.cont [3/16] 0.0, 128
        %373 = vxpose.xlu0.b32.cont [4/16] 0.0, 128
        %374 = vxpose.xlu0.b32.cont [5/16] 0.0, 128
        %375 = vxpose.xlu0.b32.cont [6/16] 0.0, 128
        %376 = vxpose.xlu0.b32.cont [7/16] 0.0, 128
        %377 = vxpose.xlu0.b32.cont [8/16] 0.0, 128
        %378 = vxpose.xlu0.b32.cont [9/16] 0.0, 128
        %379 = vxpose.xlu0.b32.cont [10/16] 0.0, 128
        %380 = vxpose.xlu0.b32.cont [11/16] 0.0, 128
        %381 = vxpose.xlu0.b32.cont [12/16] 0.0, 128
        %382 = vxpose.xlu0.b32.cont [13/16] 0.0, 128
        %383 = vxpose.xlu0.b32.cont [14/16] 0.0, 128
        %384 = vxpose.xlu0.b32.cont [15/16] 0.0, 128
        %385 = vxpose.xlu0.b32.end [16/16] 0.0, 128
        %v386 = vpop.trf.xlu0
        %v387 = vpop.trf.xlu0
        %v388 = vpop.trf.xlu0
        %v389 = vpop.trf.xlu0
        %v390 = vpop.trf.xlu0
        %v391 = vpop.trf.xlu0
        %v392 = vpop.trf.xlu0
        %v393 = vpop.trf.xlu0
        %v394 = vpop.trf.xlu0
        %v395 = vpop.trf.xlu0
        %v396 = vpop.trf.xlu0
        %v397 = vpop.trf.xlu0
        %v398 = vpop.trf.xlu0
        %v399 = vpop.trf.xlu0
        %v400 = vpop.trf.xlu0
        %v401 = vpop.trf.xlu0
        %402 = vxpose.xlu0.b32.start [1/16] %v301, 128
        %403 = vxpose.xlu0.b32.cont [2/16] 0.0, 128
        %404 = vxpose.xlu0.b32.cont [3/16] 0.0, 128
        %405 = vxpose.xlu0.b32.cont [4/16] 0.0, 128
        %406 = vxpose.xlu0.b32.cont [5/16] 0.0, 128
        %407 = vxpose.xlu0.b32.cont [6/16] 0.0, 128
        %408 = vxpose.xlu0.b32.cont [7/16] 0.0, 128
        %409 = vxpose.xlu0.b32.cont [8/16] 0.0, 128
        %410 = vxpose.xlu0.b32.cont [9/16] 0.0, 128
        %411 = vxpose.xlu0.b32.cont [10/16] 0.0, 128
        %412 = vxpose.xlu0.b32.cont [11/16] 0.0, 128
        %413 = vxpose.xlu0.b32.cont [12/16] 0.0, 128
        %414 = vxpose.xlu0.b32.cont [13/16] 0.0, 128
        %415 = vxpose.xlu0.b32.cont [14/16] 0.0, 128
        %416 = vxpose.xlu0.b32.cont [15/16] 0.0, 128
        %417 = vxpose.xlu0.b32.end [16/16] 0.0, 128
        %v418 = vpop.trf.xlu0
        %v419 = vpop.trf.xlu0
        %v420 = vpop.trf.xlu0
        %v421 = vpop.trf.xlu0
        %v422 = vpop.trf.xlu0
        %v423 = vpop.trf.xlu0
        %v424 = vpop.trf.xlu0
        %v425 = vpop.trf.xlu0
        %v426 = vpop.trf.xlu0
        %v427 = vpop.trf.xlu0
        %v428 = vpop.trf.xlu0
        %v429 = vpop.trf.xlu0
        %v430 = vpop.trf.xlu0
        %v431 = vpop.trf.xlu0
        %v432 = vpop.trf.xlu0
        %v433 = vpop.trf.xlu0
        %vm434 = vcmask 64512
        %v435 = vsel %vm434, %v284, 0
        %437 = vmatprep.subr.mxu0 0.0
        %438 = vmatpush1.msra.mxu0 %v322
        %439 = vmatprep.subr.mxu0 0.0
        %440 = vmatpush1.msra.mxu0 0.0
        %441 = vmatprep.subr.mxu0 0.0
        %442 = vmatpush1.msra.mxu0 0.0
        %443 = vmatprep.subr.mxu0 0.0
        %444 = vmatpush1.msra.mxu0 0.0
        %445 = vmatprep.subr.mxu0 0.0
        %446 = vmatpush1.msra.mxu0 0.0
        %447 = vmatprep.subr.mxu0 0.0
        %448 = vmatpush1.msra.mxu0 0.0
        %449 = vmatprep.subr.mxu0 0.0
        %450 = vmatpush1.msra.mxu0 0.0
        %451 = vmatprep.subr.mxu0 0.0
        %452 = vmatpush1.msra.mxu0 0.0
        %453 = vmatprep.subr.mxu0 0.0
        %454 = vmatpush1.msra.mxu0 0.0
        %455 = vmatprep.subr.mxu0 0.0
        %456 = vmatpush1.msra.mxu0 0.0
        %457 = vmatprep.subr.mxu0 0.0
        %458 = vmatpush1.msra.mxu0 0.0
        %459 = vmatprep.subr.mxu0 0.0
        %460 = vmatpush1.msra.mxu0 0.0
        %461 = vmatprep.subr.mxu0 0.0
        %462 = vmatpush1.msra.mxu0 0.0
        %463 = vmatprep.subr.mxu0 0.0
        %464 = vmatpush1.msra.mxu0 0.0
        %465 = vmatprep.subr.mxu0 0.0
        %466 = vmatpush1.msra.mxu0 0.0
        %467 = vmatprep.subr.mxu0 0.0
        %468 = vmatpush1.msra.mxu0 0.0
        %469 = vmatprep.subr.mxu0 0.0
        %470 = vmatpush1.msra.mxu0 0.0
        %471 = vmatprep.subr.mxu0 0.0
        %472 = vmatpush1.msra.mxu0 0.0
        %473 = vmatprep.subr.mxu0 0.0
        %474 = vmatpush1.msra.mxu0 0.0
        %475 = vmatprep.subr.mxu0 0.0
        %476 = vmatpush1.msra.mxu0 0.0
        %477 = vmatprep.subr.mxu0 0.0
        %478 = vmatpush1.msra.mxu0 0.0
        %479 = vmatprep.subr.mxu0 0.0
        %480 = vmatpush1.msra.mxu0 0.0
        %481 = vmatprep.subr.mxu0 0.0
        %482 = vmatpush1.msra.mxu0 0.0
        %483 = vmatprep.subr.mxu0 0.0
        %484 = vmatpush1.msra.mxu0 0.0
        %485 = vmatprep.subr.mxu0 0.0
        %486 = vmatpush1.msra.mxu0 0.0
        %487 = vmatprep.subr.mxu0 0.0
        %488 = vmatpush1.msra.mxu0 0.0
        %489 = vmatprep.subr.mxu0 0.0
        %490 = vmatpush1.msra.mxu0 0.0
        %491 = vmatprep.subr.mxu0 0.0
        %492 = vmatpush1.msra.mxu0 0.0
        %493 = vmatprep.subr.mxu0 0.0
        %494 = vmatpush1.msra.mxu0 0.0
        %495 = vmatprep.subr.mxu0 0.0
        %496 = vmatpush1.msra.mxu0 0.0
        %497 = vmatprep.subr.mxu0 0.0
        %498 = vmatpush1.msra.mxu0 0.0
        %499 = vmatprep.subr.mxu0 0.0
        %500 = vmatpush1.msra.mxu0 0.0
        %501 = vmatprep.mubr.f32.mxu0 0.0
        %502 = vmatmul.mubr.f32.gmra.mrb[0].mxu0 %v435
        %v503 = vpop.f32.mrb[0].mxu0
        %v504 = vadd.f32 0.0, %v503
        %v505 = vpop.f32.mrb[0].mxu0
        %506 = vdwg.mxu0
        %v507 = vsel %vm434, %v289, 0
        %509 = vmatprep.subr.mxu0 0.0
        %510 = vmatpush1.msra.mxu0 %v354
        %511 = vmatprep.subr.mxu0 0.0
        %512 = vmatpush1.msra.mxu0 0.0
        %513 = vmatprep.subr.mxu0 0.0
        %514 = vmatpush1.msra.mxu0 0.0
        %515 = vmatprep.subr.mxu0 0.0
        %516 = vmatpush1.msra.mxu0 0.0
        %517 = vmatprep.subr.mxu0 0.0
        %518 = vmatpush1.msra.mxu0 0.0
        %519 = vmatprep.subr.mxu0 0.0
        %520 = vmatpush1.msra.mxu0 0.0
        %521 = vmatprep.subr.mxu0 0.0
        %522 = vmatpush1.msra.mxu0 0.0
        %523 = vmatprep.subr.mxu0 0.0
        %524 = vmatpush1.msra.mxu0 0.0
        %525 = vmatprep.subr.mxu0 0.0
        %526 = vmatpush1.msra.mxu0 0.0
        %527 = vmatprep.subr.mxu0 0.0
        %528 = vmatpush1.msra.mxu0 0.0
        %529 = vmatprep.subr.mxu0 0.0
        %530 = vmatpush1.msra.mxu0 0.0
        %531 = vmatprep.subr.mxu0 0.0
        %532 = vmatpush1.msra.mxu0 0.0
        %533 = vmatprep.subr.mxu0 0.0
        %534 = vmatpush1.msra.mxu0 0.0
        %535 = vmatprep.subr.mxu0 0.0
        %536 = vmatpush1.msra.mxu0 0.0
        %537 = vmatprep.subr.mxu0 0.0
        %538 = vmatpush1.msra.mxu0 0.0
        %539 = vmatprep.subr.mxu0 0.0
        %540 = vmatpush1.msra.mxu0 0.0
        %541 = vmatprep.subr.mxu0 0.0
        %542 = vmatpush1.msra.mxu0 0.0
        %543 = vmatprep.subr.mxu0 0.0
        %544 = vmatpush1.msra.mxu0 0.0
        %545 = vmatprep.subr.mxu0 0.0
        %546 = vmatpush1.msra.mxu0 0.0
        %547 = vmatprep.subr.mxu0 0.0
        %548 = vmatpush1.msra.mxu0 0.0
        %549 = vmatprep.subr.mxu0 0.0
        %550 = vmatpush1.msra.mxu0 0.0
        %551 = vmatprep.subr.mxu0 0.0
        %552 = vmatpush1.msra.mxu0 0.0
        %553 = vmatprep.subr.mxu0 0.0
        %554 = vmatpush1.msra.mxu0 0.0
        %555 = vmatprep.subr.mxu0 0.0
        %556 = vmatpush1.msra.mxu0 0.0
        %557 = vmatprep.subr.mxu0 0.0
        %558 = vmatpush1.msra.mxu0 0.0
        %559 = vmatprep.subr.mxu0 0.0
        %560 = vmatpush1.msra.mxu0 0.0
        %561 = vmatprep.subr.mxu0 0.0
        %562 = vmatpush1.msra.mxu0 0.0
        %563 = vmatprep.subr.mxu0 0.0
        %564 = vmatpush1.msra.mxu0 0.0
        %565 = vmatprep.subr.mxu0 0.0
        %566 = vmatpush1.msra.mxu0 0.0
        %567 = vmatprep.subr.mxu0 0.0
        %568 = vmatpush1.msra.mxu0 0.0
        %569 = vmatprep.subr.mxu0 0.0
        %570 = vmatpush1.msra.mxu0 0.0
        %571 = vmatprep.subr.mxu0 0.0
        %572 = vmatpush1.msra.mxu0 0.0
        %573 = vmatprep.mubr.f32.mxu0 0.0
        %574 = vmatmul.mubr.f32.gmra.mrb[0].mxu0 %v507
        %v575 = vpop.f32.mrb[0].mxu0
        %v576 = vadd.f32 0.0, %v575
        %v577 = vpop.f32.mrb[0].mxu0
        %578 = vdwg.mxu0
        %v579 = vsel %vm434, %v291, 0
        %581 = vmatprep.subr.mxu0 0.0
        %582 = vmatpush1.msra.mxu0 %v386
        %583 = vmatprep.subr.mxu0 0.0
        %584 = vmatpush1.msra.mxu0 0.0
        %585 = vmatprep.subr.mxu0 0.0
        %586 = vmatpush1.msra.mxu0 0.0
        %587 = vmatprep.subr.mxu0 0.0
        %588 = vmatpush1.msra.mxu0 0.0
        %589 = vmatprep.subr.mxu0 0.0
        %590 = vmatpush1.msra.mxu0 0.0
        %591 = vmatprep.subr.mxu0 0.0
        %592 = vmatpush1.msra.mxu0 0.0
        %593 = vmatprep.subr.mxu0 0.0
        %594 = vmatpush1.msra.mxu0 0.0
        %595 = vmatprep.subr.mxu0 0.0
        %596 = vmatpush1.msra.mxu0 0.0
        %597 = vmatprep.subr.mxu0 0.0
        %598 = vmatpush1.msra.mxu0 0.0
        %599 = vmatprep.subr.mxu0 0.0
        %600 = vmatpush1.msra.mxu0 0.0
        %601 = vmatprep.subr.mxu0 0.0
        %602 = vmatpush1.msra.mxu0 0.0
        %603 = vmatprep.subr.mxu0 0.0
        %604 = vmatpush1.msra.mxu0 0.0
        %605 = vmatprep.subr.mxu0 0.0
        %606 = vmatpush1.msra.mxu0 0.0
        %607 = vmatprep.subr.mxu0 0.0
        %608 = vmatpush1.msra.mxu0 0.0
        %609 = vmatprep.subr.mxu0 0.0
        %610 = vmatpush1.msra.mxu0 0.0
        %611 = vmatprep.subr.mxu0 0.0
        %612 = vmatpush1.msra.mxu0 0.0
        %613 = vmatprep.subr.mxu0 0.0
        %614 = vmatpush1.msra.mxu0 0.0
        %615 = vmatprep.subr.mxu0 0.0
        %616 = vmatpush1.msra.mxu0 0.0
        %617 = vmatprep.subr.mxu0 0.0
        %618 = vmatpush1.msra.mxu0 0.0
        %619 = vmatprep.subr.mxu0 0.0
        %620 = vmatpush1.msra.mxu0 0.0
        %621 = vmatprep.subr.mxu0 0.0
        %622 = vmatpush1.msra.mxu0 0.0
        %623 = vmatprep.subr.mxu0 0.0
        %624 = vmatpush1.msra.mxu0 0.0
        %625 = vmatprep.subr.mxu0 0.0
        %626 = vmatpush1.msra.mxu0 0.0
        %627 = vmatprep.subr.mxu0 0.0
        %628 = vmatpush1.msra.mxu0 0.0
        %629 = vmatprep.subr.mxu0 0.0
        %630 = vmatpush1.msra.mxu0 0.0
        %631 = vmatprep.subr.mxu0 0.0
        %632 = vmatpush1.msra.mxu0 0.0
        %633 = vmatprep.subr.mxu0 0.0
        %634 = vmatpush1.msra.mxu0 0.0
        %635 = vmatprep.subr.mxu0 0.0
        %636 = vmatpush1.msra.mxu0 0.0
        %637 = vmatprep.subr.mxu0 0.0
        %638 = vmatpush1.msra.mxu0 0.0
        %639 = vmatprep.subr.mxu0 0.0
        %640 = vmatpush1.msra.mxu0 0.0
        %641 = vmatprep.subr.mxu0 0.0
        %642 = vmatpush1.msra.mxu0 0.0
        %643 = vmatprep.subr.mxu0 0.0
        %644 = vmatpush1.msra.mxu0 0.0
        %645 = vmatprep.mubr.f32.mxu0 0.0
        %646 = vmatmul.mubr.f32.gmra.mrb[0].mxu0 %v579
        %v647 = vpop.f32.mrb[0].mxu0
        %v648 = vadd.f32 0.0, %v647
        %v649 = vpop.f32.mrb[0].mxu0
        %650 = vdwg.mxu0
        %v651 = vsel %vm434, %v293, 0
        %653 = vmatprep.subr.mxu0 0.0
        %654 = vmatpush1.msra.mxu0 %v418
        %655 = vmatprep.subr.mxu0 0.0
        %656 = vmatpush1.msra.mxu0 0.0
        %657 = vmatprep.subr.mxu0 0.0
        %658 = vmatpush1.msra.mxu0 0.0
        %659 = vmatprep.subr.mxu0 0.0
        %660 = vmatpush1.msra.mxu0 0.0
        %661 = vmatprep.subr.mxu0 0.0
        %662 = vmatpush1.msra.mxu0 0.0
        %663 = vmatprep.subr.mxu0 0.0
        %664 = vmatpush1.msra.mxu0 0.0
        %665 = vmatprep.subr.mxu0 0.0
        %666 = vmatpush1.msra.mxu0 0.0
        %667 = vmatprep.subr.mxu0 0.0
        %668 = vmatpush1.msra.mxu0 0.0
        %669 = vmatprep.subr.mxu0 0.0
        %670 = vmatpush1.msra.mxu0 0.0
        %671 = vmatprep.subr.mxu0 0.0
        %672 = vmatpush1.msra.mxu0 0.0
        %673 = vmatprep.subr.mxu0 0.0
        %674 = vmatpush1.msra.mxu0 0.0
        %675 = vmatprep.subr.mxu0 0.0
        %676 = vmatpush1.msra.mxu0 0.0
        %677 = vmatprep.subr.mxu0 0.0
        %678 = vmatpush1.msra.mxu0 0.0
        %679 = vmatprep.subr.mxu0 0.0
        %680 = vmatpush1.msra.mxu0 0.0
        %681 = vmatprep.subr.mxu0 0.0
        %682 = vmatpush1.msra.mxu0 0.0
        %683 = vmatprep.subr.mxu0 0.0
        %684 = vmatpush1.msra.mxu0 0.0
        %685 = vmatprep.subr.mxu0 0.0
        %686 = vmatpush1.msra.mxu0 0.0
        %687 = vmatprep.subr.mxu0 0.0
        %688 = vmatpush1.msra.mxu0 0.0
        %689 = vmatprep.subr.mxu0 0.0
        %690 = vmatpush1.msra.mxu0 0.0
        %691 = vmatprep.subr.mxu0 0.0
        %692 = vmatpush1.msra.mxu0 0.0
        %693 = vmatprep.subr.mxu0 0.0
        %694 = vmatpush1.msra.mxu0 0.0
        %695 = vmatprep.subr.mxu0 0.0
        %696 = vmatpush1.msra.mxu0 0.0
        %697 = vmatprep.subr.mxu0 0.0
        %698 = vmatpush1.msra.mxu0 0.0
        %699 = vmatprep.subr.mxu0 0.0
        %700 = vmatpush1.msra.mxu0 0.0
        %701 = vmatprep.subr.mxu0 0.0
        %702 = vmatpush1.msra.mxu0 0.0
        %703 = vmatprep.subr.mxu0 0.0
        %704 = vmatpush1.msra.mxu0 0.0
        %705 = vmatprep.subr.mxu0 0.0
        %706 = vmatpush1.msra.mxu0 0.0
        %707 = vmatprep.subr.mxu0 0.0
        %708 = vmatpush1.msra.mxu0 0.0
        %709 = vmatprep.subr.mxu0 0.0
        %710 = vmatpush1.msra.mxu0 0.0
        %711 = vmatprep.subr.mxu0 0.0
        %712 = vmatpush1.msra.mxu0 0.0
        %713 = vmatprep.subr.mxu0 0.0
        %714 = vmatpush1.msra.mxu0 0.0
        %715 = vmatprep.subr.mxu0 0.0
        %716 = vmatpush1.msra.mxu0 0.0
        %717 = vmatprep.mubr.f32.mxu0 0.0
        %718 = vmatmul.mubr.f32.gmra.mrb[0].mxu0 %v651
        %v719 = vpop.f32.mrb[0].mxu0
        %v720 = vadd.f32 0.0, %v719
        %v721 = vpop.f32.mrb[0].mxu0
        %722 = vdwg.mxu0
        %v723 = vsel %vm434, %v504, -inf
        %724 = vmax.xlane.f32.xlu0 %v723
        %v725 = vpop.xlane.xlu0 %724
        %v726 = vsel %vm434, %v576, -inf
        %727 = vmax.xlane.f32.xlu0 %v726
        %v728 = vpop.xlane.xlu0 %727
        %v729 = vsel %vm434, %v648, -inf
        %730 = vmax.xlane.f32.xlu0 %v729
        %v731 = vpop.xlane.xlu0 %730
        %v732 = vsel %vm434, %v720, -inf
        %733 = vmax.xlane.f32.xlu0 %v732
        %v734 = vpop.xlane.xlu0 %733
        %v735 = vsub.f32 %v504, %v725
        %v736 = vsub.f32 %v576, %v728
        %v737 = vsub.f32 %v648, %v731
        %v738 = vsub.f32 %v720, %v734
        %v739 = vmul.f32 %v735, 1.442695
        %v740 = vpow.pop %v739
        %v741 = vmul.f32 %v736, 1.442695
        %v742 = vpow.pop %v741
        %v743 = vmul.f32 %v737, 1.442695
        %v744 = vpow.pop %v743
        %v745 = vmul.f32 %v738, 1.442695
        %v746 = vpow.pop %v745
        %v747 = vsel %vm434, %v740, 0.0
        %748 = vadd.xlane.f32.xlu0 %v747
        %v749 = vpop.xlane.xlu0 %748
        %v750 = vsel %vm434, %v742, 0.0
        %751 = vadd.xlane.f32.xlu0 %v750
        %v752 = vpop.xlane.xlu0 %751
        %v753 = vsel %vm434, %v744, 0.0
        %754 = vadd.xlane.f32.xlu0 %v753
        %v755 = vpop.xlane.xlu0 %754
        %v756 = vsel %vm434, %v746, 0.0
        %757 = vadd.xlane.f32.xlu0 %v756
        %v758 = vpop.xlane.xlu0 %757
        %v759 = vrcp.pop %v749
        %v760 = vmul.f32 %v740, %v759
        %v761 = vrcp.pop %v752
        %v762 = vmul.f32 %v742, %v761
        %v763 = vrcp.pop %v755
        %v764 = vmul.f32 %v744, %v763
        %v765 = vrcp.pop %v758
        %v766 = vmul.f32 %v746, %v765
        %767 = vrot.lane.b32.xlu0 %v284, 64
        %v768 = vpop.permute.xlu0 %767
        %769 = vrot.lane.b32.xlu0 %v289, 64
        %v770 = vpop.permute.xlu0 %769
        %771 = vrot.lane.b32.xlu0 %v291, 64
        %v772 = vpop.permute.xlu0 %771
        %773 = vrot.lane.b32.xlu0 %v293, 64
        %v774 = vpop.permute.xlu0 %773
        %779 = vxpose.xlu0.b32.start [1/16] %v768, 128
        %780 = vxpose.xlu0.b32.cont [2/16] 0.0, 128
        %781 = vxpose.xlu0.b32.cont [3/16] 0.0, 128
        %782 = vxpose.xlu0.b32.cont [4/16] 0.0, 128
        %783 = vxpose.xlu0.b32.cont [5/16] 0.0, 128
        %784 = vxpose.xlu0.b32.cont [6/16] 0.0, 128
        %785 = vxpose.xlu0.b32.cont [7/16] 0.0, 128
        %786 = vxpose.xlu0.b32.cont [8/16] 0.0, 128
        %787 = vxpose.xlu0.b32.cont [9/16] 0.0, 128
        %788 = vxpose.xlu0.b32.cont [10/16] 0.0, 128
        %789 = vxpose.xlu0.b32.cont [11/16] 0.0, 128
        %790 = vxpose.xlu0.b32.cont [12/16] 0.0, 128
        %791 = vxpose.xlu0.b32.cont [13/16] 0.0, 128
        %792 = vxpose.xlu0.b32.cont [14/16] 0.0, 128
        %793 = vxpose.xlu0.b32.cont [15/16] 0.0, 128
        %794 = vxpose.xlu0.b32.end [16/16] 0.0, 128
        %v795 = vpop.trf.xlu0
        %v796 = vpop.trf.xlu0
        %v797 = vpop.trf.xlu0
        %v798 = vpop.trf.xlu0
        %v799 = vpop.trf.xlu0
        %v800 = vpop.trf.xlu0
        %v801 = vpop.trf.xlu0
        %v802 = vpop.trf.xlu0
        %v803 = vpop.trf.xlu0
        %v804 = vpop.trf.xlu0
        %v805 = vpop.trf.xlu0
        %v806 = vpop.trf.xlu0
        %v807 = vpop.trf.xlu0
        %v808 = vpop.trf.xlu0
        %v809 = vpop.trf.xlu0
        %v810 = vpop.trf.xlu0
        %811 = vxpose.xlu0.b32.start [1/16] %v770, 128
        %812 = vxpose.xlu0.b32.cont [2/16] 0.0, 128
        %813 = vxpose.xlu0.b32.cont [3/16] 0.0, 128
        %814 = vxpose.xlu0.b32.cont [4/16] 0.0, 128
        %815 = vxpose.xlu0.b32.cont [5/16] 0.0, 128
        %816 = vxpose.xlu0.b32.cont [6/16] 0.0, 128
        %817 = vxpose.xlu0.b32.cont [7/16] 0.0, 128
        %818 = vxpose.xlu0.b32.cont [8/16] 0.0, 128
        %819 = vxpose.xlu0.b32.cont [9/16] 0.0, 128
        %820 = vxpose.xlu0.b32.cont [10/16] 0.0, 128
        %821 = vxpose.xlu0.b32.cont [11/16] 0.0, 128
        %822 = vxpose.xlu0.b32.cont [12/16] 0.0, 128
        %823 = vxpose.xlu0.b32.cont [13/16] 0.0, 128
        %824 = vxpose.xlu0.b32.cont [14/16] 0.0, 128
        %825 = vxpose.xlu0.b32.cont [15/16] 0.0, 128
        %826 = vxpose.xlu0.b32.end [16/16] 0.0, 128
        %v827 = vpop.trf.xlu0
        %v828 = vpop.trf.xlu0
        %v829 = vpop.trf.xlu0
        %v830 = vpop.trf.xlu0
        %v831 = vpop.trf.xlu0
        %v832 = vpop.trf.xlu0
        %v833 = vpop.trf.xlu0
        %v834 = vpop.trf.xlu0
        %v835 = vpop.trf.xlu0
        %v836 = vpop.trf.xlu0
        %v837 = vpop.trf.xlu0
        %v838 = vpop.trf.xlu0
        %v839 = vpop.trf.xlu0
        %v840 = vpop.trf.xlu0
        %v841 = vpop.trf.xlu0
        %v842 = vpop.trf.xlu0
        %843 = vxpose.xlu0.b32.start [1/16] %v772, 128
        %844 = vxpose.xlu0.b32.cont [2/16] 0.0, 128
        %845 = vxpose.xlu0.b32.cont [3/16] 0.0, 128
        %846 = vxpose.xlu0.b32.cont [4/16] 0.0, 128
        %847 = vxpose.xlu0.b32.cont [5/16] 0.0, 128
        %848 = vxpose.xlu0.b32.cont [6/16] 0.0, 128
        %849 = vxpose.xlu0.b32.cont [7/16] 0.0, 128
        %850 = vxpose.xlu0.b32.cont [8/16] 0.0, 128
        %851 = vxpose.xlu0.b32.cont [9/16] 0.0, 128
        %852 = vxpose.xlu0.b32.cont [10/16] 0.0, 128
        %853 = vxpose.xlu0.b32.cont [11/16] 0.0, 128
        %854 = vxpose.xlu0.b32.cont [12/16] 0.0, 128
        %855 = vxpose.xlu0.b32.cont [13/16] 0.0, 128
        %856 = vxpose.xlu0.b32.cont [14/16] 0.0, 128
        %857 = vxpose.xlu0.b32.cont [15/16] 0.0, 128
        %858 = vxpose.xlu0.b32.end [16/16] 0.0, 128
        %v859 = vpop.trf.xlu0
        %v860 = vpop.trf.xlu0
        %v861 = vpop.trf.xlu0
        %v862 = vpop.trf.xlu0
        %v863 = vpop.trf.xlu0
        %v864 = vpop.trf.xlu0
        %v865 = vpop.trf.xlu0
        %v866 = vpop.trf.xlu0
        %v867 = vpop.trf.xlu0
        %v868 = vpop.trf.xlu0
        %v869 = vpop.trf.xlu0
        %v870 = vpop.trf.xlu0
        %v871 = vpop.trf.xlu0
        %v872 = vpop.trf.xlu0
        %v873 = vpop.trf.xlu0
        %v874 = vpop.trf.xlu0
        %875 = vxpose.xlu0.b32.start [1/16] %v774, 128
        %876 = vxpose.xlu0.b32.cont [2/16] 0.0, 128
        %877 = vxpose.xlu0.b32.cont [3/16] 0.0, 128
        %878 = vxpose.xlu0.b32.cont [4/16] 0.0, 128
        %879 = vxpose.xlu0.b32.cont [5/16] 0.0, 128
        %880 = vxpose.xlu0.b32.cont [6/16] 0.0, 128
        %881 = vxpose.xlu0.b32.cont [7/16] 0.0, 128
        %882 = vxpose.xlu0.b32.cont [8/16] 0.0, 128
        %883 = vxpose.xlu0.b32.cont [9/16] 0.0, 128
        %884 = vxpose.xlu0.b32.cont [10/16] 0.0, 128
        %885 = vxpose.xlu0.b32.cont [11/16] 0.0, 128
        %886 = vxpose.xlu0.b32.cont [12/16] 0.0, 128
        %887 = vxpose.xlu0.b32.cont [13/16] 0.0, 128
        %888 = vxpose.xlu0.b32.cont [14/16] 0.0, 128
        %889 = vxpose.xlu0.b32.cont [15/16] 0.0, 128
        %890 = vxpose.xlu0.b32.end [16/16] 0.0, 128
        %v891 = vpop.trf.xlu0
        %v892 = vpop.trf.xlu0
        %v893 = vpop.trf.xlu0
        %v894 = vpop.trf.xlu0
        %v895 = vpop.trf.xlu0
        %v896 = vpop.trf.xlu0
        %v897 = vpop.trf.xlu0
        %v898 = vpop.trf.xlu0
        %v899 = vpop.trf.xlu0
        %v900 = vpop.trf.xlu0
        %v901 = vpop.trf.xlu0
        %v902 = vpop.trf.xlu0
        %v903 = vpop.trf.xlu0
        %v904 = vpop.trf.xlu0
        %v905 = vpop.trf.xlu0
        %v906 = vpop.trf.xlu0
        %v908 = vsel %vm434, %v795, 0
        %v911 = vsel %vm434, %v760, 0
        %913 = vmatprep.subr.mxu0 0.0
        %914 = vmatpush1.xpose.msra.mxu0 %v911
        %915 = vmatprep.subr.mxu0 0.0
        %916 = vmatpush1.xpose.msra.mxu0 0.0
        %917 = vmatprep.subr.mxu0 0.0
        %918 = vmatpush1.xpose.msra.mxu0 0.0
        %919 = vmatprep.subr.mxu0 0.0
        %920 = vmatpush1.xpose.msra.mxu0 0.0
        %921 = vmatprep.subr.mxu0 0.0
        %922 = vmatpush1.xpose.msra.mxu0 0.0
        %923 = vmatprep.subr.mxu0 0.0
        %924 = vmatpush1.xpose.msra.mxu0 0.0
        %925 = vmatprep.subr.mxu0 0.0
        %926 = vmatpush1.xpose.msra.mxu0 0.0
        %927 = vmatprep.subr.mxu0 0.0
        %928 = vmatpush1.xpose.msra.mxu0 0.0
        %929 = vmatprep.subr.mxu0 0.0
        %930 = vmatpush1.xpose.msra.mxu0 0.0
        %931 = vmatprep.subr.mxu0 0.0
        %932 = vmatpush1.xpose.msra.mxu0 0.0
        %933 = vmatprep.subr.mxu0 0.0
        %934 = vmatpush1.xpose.msra.mxu0 0.0
        %935 = vmatprep.subr.mxu0 0.0
        %936 = vmatpush1.xpose.msra.mxu0 0.0
        %937 = vmatprep.subr.mxu0 0.0
        %938 = vmatpush1.xpose.msra.mxu0 0.0
        %939 = vmatprep.subr.mxu0 0.0
        %940 = vmatpush1.xpose.msra.mxu0 0.0
        %941 = vmatprep.subr.mxu0 0.0
        %942 = vmatpush1.xpose.msra.mxu0 0.0
        %943 = vmatprep.subr.mxu0 0.0
        %944 = vmatpush1.xpose.msra.mxu0 0.0
        %945 = vmatprep.subr.mxu0 0.0
        %946 = vmatpush1.xpose.msra.mxu0 0.0
        %947 = vmatprep.subr.mxu0 0.0
        %948 = vmatpush1.xpose.msra.mxu0 0.0
        %949 = vmatprep.subr.mxu0 0.0
        %950 = vmatpush1.xpose.msra.mxu0 0.0
        %951 = vmatprep.subr.mxu0 0.0
        %952 = vmatpush1.xpose.msra.mxu0 0.0
        %953 = vmatprep.subr.mxu0 0.0
        %954 = vmatpush1.xpose.msra.mxu0 0.0
        %955 = vmatprep.subr.mxu0 0.0
        %956 = vmatpush1.xpose.msra.mxu0 0.0
        %957 = vmatprep.subr.mxu0 0.0
        %958 = vmatpush1.xpose.msra.mxu0 0.0
        %959 = vmatprep.subr.mxu0 0.0
        %960 = vmatpush1.xpose.msra.mxu0 0.0
        %961 = vmatprep.subr.mxu0 0.0
        %962 = vmatpush1.xpose.msra.mxu0 0.0
        %963 = vmatprep.subr.mxu0 0.0
        %964 = vmatpush1.xpose.msra.mxu0 0.0
        %965 = vmatprep.subr.mxu0 0.0
        %966 = vmatpush1.xpose.msra.mxu0 0.0
        %967 = vmatprep.subr.mxu0 0.0
        %968 = vmatpush1.xpose.msra.mxu0 0.0
        %969 = vmatprep.subr.mxu0 0.0
        %970 = vmatpush1.xpose.msra.mxu0 0.0
        %971 = vmatprep.subr.mxu0 0.0
        %972 = vmatpush1.xpose.msra.mxu0 0.0
        %973 = vmatprep.subr.mxu0 0.0
        %974 = vmatpush1.xpose.msra.mxu0 0.0
        %975 = vmatprep.subr.mxu0 0.0
        %976 = vmatpush1.xpose.msra.mxu0 0.0
        %977 = vmatprep.mubr.f32.mxu0 0.0
        %978 = vmatmul.mubr.f32.gmra.mrb[0].mxu0 %v908
        %v979 = vpop.f32.mrb[0].mxu0
        %v980 = vadd.f32 0.0, %v979
        %v981 = vpop.f32.mrb[0].mxu0
        %982 = vdwg.mxu0
        %v984 = vsel %vm434, %v827, 0
        %v987 = vsel %vm434, %v762, 0
        %989 = vmatprep.subr.mxu0 0.0
        %990 = vmatpush1.xpose.msra.mxu0 %v987
        %991 = vmatprep.subr.mxu0 0.0
        %992 = vmatpush1.xpose.msra.mxu0 0.0
        %993 = vmatprep.subr.mxu0 0.0
        %994 = vmatpush1.xpose.msra.mxu0 0.0
        %995 = vmatprep.subr.mxu0 0.0
        %996 = vmatpush1.xpose.msra.mxu0 0.0
        %997 = vmatprep.subr.mxu0 0.0
        %998 = vmatpush1.xpose.msra.mxu0 0.0
        %999 = vmatprep.subr.mxu0 0.0
        %1000 = vmatpush1.xpose.msra.mxu0 0.0
        %1001 = vmatprep.subr.mxu0 0.0
        %1002 = vmatpush1.xpose.msra.mxu0 0.0
        %1003 = vmatprep.subr.mxu0 0.0
        %1004 = vmatpush1.xpose.msra.mxu0 0.0
        %1005 = vmatprep.subr.mxu0 0.0
        %1006 = vmatpush1.xpose.msra.mxu0 0.0
        %1007 = vmatprep.subr.mxu0 0.0
        %1008 = vmatpush1.xpose.msra.mxu0 0.0
        %1009 = vmatprep.subr.mxu0 0.0
        %1010 = vmatpush1.xpose.msra.mxu0 0.0
        %1011 = vmatprep.subr.mxu0 0.0
        %1012 = vmatpush1.xpose.msra.mxu0 0.0
        %1013 = vmatprep.subr.mxu0 0.0
        %1014 = vmatpush1.xpose.msra.mxu0 0.0
        %1015 = vmatprep.subr.mxu0 0.0
        %1016 = vmatpush1.xpose.msra.mxu0 0.0
        %1017 = vmatprep.subr.mxu0 0.0
        %1018 = vmatpush1.xpose.msra.mxu0 0.0
        %1019 = vmatprep.subr.mxu0 0.0
        %1020 = vmatpush1.xpose.msra.mxu0 0.0
        %1021 = vmatprep.subr.mxu0 0.0
        %1022 = vmatpush1.xpose.msra.mxu0 0.0
        %1023 = vmatprep.subr.mxu0 0.0
        %1024 = vmatpush1.xpose.msra.mxu0 0.0
        %1025 = vmatprep.subr.mxu0 0.0
        %1026 = vmatpush1.xpose.msra.mxu0 0.0
        %1027 = vmatprep.subr.mxu0 0.0
        %1028 = vmatpush1.xpose.msra.mxu0 0.0
        %1029 = vmatprep.subr.mxu0 0.0
        %1030 = vmatpush1.xpose.msra.mxu0 0.0
        %1031 = vmatprep.subr.mxu0 0.0
        %1032 = vmatpush1.xpose.msra.mxu0 0.0
        %1033 = vmatprep.subr.mxu0 0.0
        %1034 = vmatpush1.xpose.msra.mxu0 0.0
        %1035 = vmatprep.subr.mxu0 0.0
        %1036 = vmatpush1.xpose.msra.mxu0 0.0
        %1037 = vmatprep.subr.mxu0 0.0
        %1038 = vmatpush1.xpose.msra.mxu0 0.0
        %1039 = vmatprep.subr.mxu0 0.0
        %1040 = vmatpush1.xpose.msra.mxu0 0.0
        %1041 = vmatprep.subr.mxu0 0.0
        %1042 = vmatpush1.xpose.msra.mxu0 0.0
        %1043 = vmatprep.subr.mxu0 0.0
        %1044 = vmatpush1.xpose.msra.mxu0 0.0
        %1045 = vmatprep.subr.mxu0 0.0
        %1046 = vmatpush1.xpose.msra.mxu0 0.0
        %1047 = vmatprep.subr.mxu0 0.0
        %1048 = vmatpush1.xpose.msra.mxu0 0.0
        %1049 = vmatprep.subr.mxu0 0.0
        %1050 = vmatpush1.xpose.msra.mxu0 0.0
        %1051 = vmatprep.subr.mxu0 0.0
        %1052 = vmatpush1.xpose.msra.mxu0 0.0
        %1053 = vmatprep.mubr.f32.mxu0 0.0
        %1054 = vmatmul.mubr.f32.gmra.mrb[0].mxu0 %v984
        %v1055 = vpop.f32.mrb[0].mxu0
        %v1056 = vadd.f32 0.0, %v1055
        %v1057 = vpop.f32.mrb[0].mxu0
        %1058 = vdwg.mxu0
        %v1060 = vsel %vm434, %v859, 0
        %v1063 = vsel %vm434, %v764, 0
        %1065 = vmatprep.subr.mxu0 0.0
        %1066 = vmatpush1.xpose.msra.mxu0 %v1063
        %1067 = vmatprep.subr.mxu0 0.0
        %1068 = vmatpush1.xpose.msra.mxu0 0.0
        %1069 = vmatprep.subr.mxu0 0.0
        %1070 = vmatpush1.xpose.msra.mxu0 0.0
        %1071 = vmatprep.subr.mxu0 0.0
        %1072 = vmatpush1.xpose.msra.mxu0 0.0
        %1073 = vmatprep.subr.mxu0 0.0
        %1074 = vmatpush1.xpose.msra.mxu0 0.0
        %1075 = vmatprep.subr.mxu0 0.0
        %1076 = vmatpush1.xpose.msra.mxu0 0.0
        %1077 = vmatprep.subr.mxu0 0.0
        %1078 = vmatpush1.xpose.msra.mxu0 0.0
        %1079 = vmatprep.subr.mxu0 0.0
        %1080 = vmatpush1.xpose.msra.mxu0 0.0
        %1081 = vmatprep.subr.mxu0 0.0
        %1082 = vmatpush1.xpose.msra.mxu0 0.0
        %1083 = vmatprep.subr.mxu0 0.0
        %1084 = vmatpush1.xpose.msra.mxu0 0.0
        %1085 = vmatprep.subr.mxu0 0.0
        %1086 = vmatpush1.xpose.msra.mxu0 0.0
        %1087 = vmatprep.subr.mxu0 0.0
        %1088 = vmatpush1.xpose.msra.mxu0 0.0
        %1089 = vmatprep.subr.mxu0 0.0
        %1090 = vmatpush1.xpose.msra.mxu0 0.0
        %1091 = vmatprep.subr.mxu0 0.0
        %1092 = vmatpush1.xpose.msra.mxu0 0.0
        %1093 = vmatprep.subr.mxu0 0.0
        %1094 = vmatpush1.xpose.msra.mxu0 0.0
        %1095 = vmatprep.subr.mxu0 0.0
        %1096 = vmatpush1.xpose.msra.mxu0 0.0
        %1097 = vmatprep.subr.mxu0 0.0
        %1098 = vmatpush1.xpose.msra.mxu0 0.0
        %1099 = vmatprep.subr.mxu0 0.0
        %1100 = vmatpush1.xpose.msra.mxu0 0.0
        %1101 = vmatprep.subr.mxu0 0.0
        %1102 = vmatpush1.xpose.msra.mxu0 0.0
        %1103 = vmatprep.subr.mxu0 0.0
        %1104 = vmatpush1.xpose.msra.mxu0 0.0
        %1105 = vmatprep.subr.mxu0 0.0
        %1106 = vmatpush1.xpose.msra.mxu0 0.0
        %1107 = vmatprep.subr.mxu0 0.0
        %1108 = vmatpush1.xpose.msra.mxu0 0.0
        %1109 = vmatprep.subr.mxu0 0.0
        %1110 = vmatpush1.xpose.msra.mxu0 0.0
        %1111 = vmatprep.subr.mxu0 0.0
        %1112 = vmatpush1.xpose.msra.mxu0 0.0
        %1113 = vmatprep.subr.mxu0 0.0
        %1114 = vmatpush1.xpose.msra.mxu0 0.0
        %1115 = vmatprep.subr.mxu0 0.0
        %1116 = vmatpush1.xpose.msra.mxu0 0.0
        %1117 = vmatprep.subr.mxu0 0.0
        %1118 = vmatpush1.xpose.msra.mxu0 0.0
        %1119 = vmatprep.subr.mxu0 0.0
        %1120 = vmatpush1.xpose.msra.mxu0 0.0
        %1121 = vmatprep.subr.mxu0 0.0
        %1122 = vmatpush1.xpose.msra.mxu0 0.0
        %1123 = vmatprep.subr.mxu0 0.0
        %1124 = vmatpush1.xpose.msra.mxu0 0.0
        %1125 = vmatprep.subr.mxu0 0.0
        %1126 = vmatpush1.xpose.msra.mxu0 0.0
        %1127 = vmatprep.subr.mxu0 0.0
        %1128 = vmatpush1.xpose.msra.mxu0 0.0
        %1129 = vmatprep.mubr.f32.mxu0 0.0
        %1130 = vmatmul.mubr.f32.gmra.mrb[0].mxu0 %v1060
        %v1131 = vpop.f32.mrb[0].mxu0
        %v1132 = vadd.f32 0.0, %v1131
        %v1133 = vpop.f32.mrb[0].mxu0
        %1134 = vdwg.mxu0
        %v1136 = vsel %vm434, %v891, 0
        %v1139 = vsel %vm434, %v766, 0
        %1141 = vmatprep.subr.mxu0 0.0
        %1142 = vmatpush1.xpose.msra.mxu0 %v1139
        %1143 = vmatprep.subr.mxu0 0.0
        %1144 = vmatpush1.xpose.msra.mxu0 0.0
        %1145 = vmatprep.subr.mxu0 0.0
        %1146 = vmatpush1.xpose.msra.mxu0 0.0
        %1147 = vmatprep.subr.mxu0 0.0
        %1148 = vmatpush1.xpose.msra.mxu0 0.0
        %1149 = vmatprep.subr.mxu0 0.0
        %1150 = vmatpush1.xpose.msra.mxu0 0.0
        %1151 = vmatprep.subr.mxu0 0.0
        %1152 = vmatpush1.xpose.msra.mxu0 0.0
        %1153 = vmatprep.subr.mxu0 0.0
        %1154 = vmatpush1.xpose.msra.mxu0 0.0
        %1155 = vmatprep.subr.mxu0 0.0
        %1156 = vmatpush1.xpose.msra.mxu0 0.0
        %1157 = vmatprep.subr.mxu0 0.0
        %1158 = vmatpush1.xpose.msra.mxu0 0.0
        %1159 = vmatprep.subr.mxu0 0.0
        %1160 = vmatpush1.xpose.msra.mxu0 0.0
        %1161 = vmatprep.subr.mxu0 0.0
        %1162 = vmatpush1.xpose.msra.mxu0 0.0
        %1163 = vmatprep.subr.mxu0 0.0
        %1164 = vmatpush1.xpose.msra.mxu0 0.0
        %1165 = vmatprep.subr.mxu0 0.0
        %1166 = vmatpush1.xpose.msra.mxu0 0.0
        %1167 = vmatprep.subr.mxu0 0.0
        %1168 = vmatpush1.xpose.msra.mxu0 0.0
        %1169 = vmatprep.subr.mxu0 0.0
        %1170 = vmatpush1.xpose.msra.mxu0 0.0
        %1171 = vmatprep.subr.mxu0 0.0
        %1172 = vmatpush1.xpose.msra.mxu0 0.0
        %1173 = vmatprep.subr.mxu0 0.0
        %1174 = vmatpush1.xpose.msra.mxu0 0.0
        %1175 = vmatprep.subr.mxu0 0.0
        %1176 = vmatpush1.xpose.msra.mxu0 0.0
        %1177 = vmatprep.subr.mxu0 0.0
        %1178 = vmatpush1.xpose.msra.mxu0 0.0
        %1179 = vmatprep.subr.mxu0 0.0
        %1180 = vmatpush1.xpose.msra.mxu0 0.0
        %1181 = vmatprep.subr.mxu0 0.0
        %1182 = vmatpush1.xpose.msra.mxu0 0.0
        %1183 = vmatprep.subr.mxu0 0.0
        %1184 = vmatpush1.xpose.msra.mxu0 0.0
        %1185 = vmatprep.subr.mxu0 0.0
        %1186 = vmatpush1.xpose.msra.mxu0 0.0
        %1187 = vmatprep.subr.mxu0 0.0
        %1188 = vmatpush1.xpose.msra.mxu0 0.0
        %1189 = vmatprep.subr.mxu0 0.0
        %1190 = vmatpush1.xpose.msra.mxu0 0.0
        %1191 = vmatprep.subr.mxu0 0.0
        %1192 = vmatpush1.xpose.msra.mxu0 0.0
        %1193 = vmatprep.subr.mxu0 0.0
        %1194 = vmatpush1.xpose.msra.mxu0 0.0
        %1195 = vmatprep.subr.mxu0 0.0
        %1196 = vmatpush1.xpose.msra.mxu0 0.0
        %1197 = vmatprep.subr.mxu0 0.0
        %1198 = vmatpush1.xpose.msra.mxu0 0.0
        %1199 = vmatprep.subr.mxu0 0.0
        %1200 = vmatpush1.xpose.msra.mxu0 0.0
        %1201 = vmatprep.subr.mxu0 0.0
        %1202 = vmatpush1.xpose.msra.mxu0 0.0
        %1203 = vmatprep.subr.mxu0 0.0
        %1204 = vmatpush1.xpose.msra.mxu0 0.0
        %1205 = vmatprep.mubr.f32.mxu0 0.0
        %1206 = vmatmul.mubr.f32.gmra.mrb[0].mxu0 %v1136
        %v1207 = vpop.f32.mrb[0].mxu0
        %v1208 = vadd.f32 0.0, %v1207
        %v1209 = vpop.f32.mrb[0].mxu0
        %1210 = vdwg.mxu0
        %1211 = vxpose.xlu0.b32.start [1/16] %v980, 128
        %1212 = vxpose.xlu0.b32.cont [2/16] 0.0, 128
        %1213 = vxpose.xlu0.b32.cont [3/16] 0.0, 128
        %1214 = vxpose.xlu0.b32.cont [4/16] 0.0, 128
        %1215 = vxpose.xlu0.b32.cont [5/16] 0.0, 128
        %1216 = vxpose.xlu0.b32.cont [6/16] 0.0, 128
        %1217 = vxpose.xlu0.b32.cont [7/16] 0.0, 128
        %1218 = vxpose.xlu0.b32.cont [8/16] 0.0, 128
        %1219 = vxpose.xlu0.b32.cont [9/16] 0.0, 128
        %1220 = vxpose.xlu0.b32.cont [10/16] 0.0, 128
        %1221 = vxpose.xlu0.b32.cont [11/16] 0.0, 128
        %1222 = vxpose.xlu0.b32.cont [12/16] 0.0, 128
        %1223 = vxpose.xlu0.b32.cont [13/16] 0.0, 128
        %1224 = vxpose.xlu0.b32.cont [14/16] 0.0, 128
        %1225 = vxpose.xlu0.b32.cont [15/16] 0.0, 128
        %1226 = vxpose.xlu0.b32.end [16/16] 0.0, 128
        %v1227 = vpop.trf.xlu0
        %v1228 = vpop.trf.xlu0
        %v1229 = vpop.trf.xlu0
        %v1230 = vpop.trf.xlu0
        %v1231 = vpop.trf.xlu0
        %v1232 = vpop.trf.xlu0
        %v1233 = vpop.trf.xlu0
        %v1234 = vpop.trf.xlu0
        %v1235 = vpop.trf.xlu0
        %v1236 = vpop.trf.xlu0
        %v1237 = vpop.trf.xlu0
        %v1238 = vpop.trf.xlu0
        %v1239 = vpop.trf.xlu0
        %v1240 = vpop.trf.xlu0
        %v1241 = vpop.trf.xlu0
        %v1242 = vpop.trf.xlu0
        %1243 = vxpose.xlu0.b32.start [1/16] %v1056, 128
        %1244 = vxpose.xlu0.b32.cont [2/16] 0.0, 128
        %1245 = vxpose.xlu0.b32.cont [3/16] 0.0, 128
        %1246 = vxpose.xlu0.b32.cont [4/16] 0.0, 128
        %1247 = vxpose.xlu0.b32.cont [5/16] 0.0, 128
        %1248 = vxpose.xlu0.b32.cont [6/16] 0.0, 128
        %1249 = vxpose.xlu0.b32.cont [7/16] 0.0, 128
        %1250 = vxpose.xlu0.b32.cont [8/16] 0.0, 128
        %1251 = vxpose.xlu0.b32.cont [9/16] 0.0, 128
        %1252 = vxpose.xlu0.b32.cont [10/16] 0.0, 128
        %1253 = vxpose.xlu0.b32.cont [11/16] 0.0, 128
        %1254 = vxpose.xlu0.b32.cont [12/16] 0.0, 128
        %1255 = vxpose.xlu0.b32.cont [13/16] 0.0, 128
        %1256 = vxpose.xlu0.b32.cont [14/16] 0.0, 128
        %1257 = vxpose.xlu0.b32.cont [15/16] 0.0, 128
        %1258 = vxpose.xlu0.b32.end [16/16] 0.0, 128
        %v1259 = vpop.trf.xlu0
        %v1260 = vpop.trf.xlu0
        %v1261 = vpop.trf.xlu0
        %v1262 = vpop.trf.xlu0
        %v1263 = vpop.trf.xlu0
        %v1264 = vpop.trf.xlu0
        %v1265 = vpop.trf.xlu0
        %v1266 = vpop.trf.xlu0
        %v1267 = vpop.trf.xlu0
        %v1268 = vpop.trf.xlu0
        %v1269 = vpop.trf.xlu0
        %v1270 = vpop.trf.xlu0
        %v1271 = vpop.trf.xlu0
        %v1272 = vpop.trf.xlu0
        %v1273 = vpop.trf.xlu0
        %v1274 = vpop.trf.xlu0
        %1275 = vxpose.xlu0.b32.start [1/16] %v1132, 128
        %1276 = vxpose.xlu0.b32.cont [2/16] 0.0, 128
        %1277 = vxpose.xlu0.b32.cont [3/16] 0.0, 128
        %1278 = vxpose.xlu0.b32.cont [4/16] 0.0, 128
        %1279 = vxpose.xlu0.b32.cont [5/16] 0.0, 128
        %1280 = vxpose.xlu0.b32.cont [6/16] 0.0, 128
        %1281 = vxpose.xlu0.b32.cont [7/16] 0.0, 128
        %1282 = vxpose.xlu0.b32.cont [8/16] 0.0, 128
        %1283 = vxpose.xlu0.b32.cont [9/16] 0.0, 128
        %1284 = vxpose.xlu0.b32.cont [10/16] 0.0, 128
        %1285 = vxpose.xlu0.b32.cont [11/16] 0.0, 128
        %1286 = vxpose.xlu0.b32.cont [12/16] 0.0, 128
        %1287 = vxpose.xlu0.b32.cont [13/16] 0.0, 128
        %1288 = vxpose.xlu0.b32.cont [14/16] 0.0, 128
        %1289 = vxpose.xlu0.b32.cont [15/16] 0.0, 128
        %1290 = vxpose.xlu0.b32.end [16/16] 0.0, 128
        %v1291 = vpop.trf.xlu0
        %v1292 = vpop.trf.xlu0
        %v1293 = vpop.trf.xlu0
        %v1294 = vpop.trf.xlu0
        %v1295 = vpop.trf.xlu0
        %v1296 = vpop.trf.xlu0
        %v1297 = vpop.trf.xlu0
        %v1298 = vpop.trf.xlu0
        %v1299 = vpop.trf.xlu0
        %v1300 = vpop.trf.xlu0
        %v1301 = vpop.trf.xlu0
        %v1302 = vpop.trf.xlu0
        %v1303 = vpop.trf.xlu0
        %v1304 = vpop.trf.xlu0
        %v1305 = vpop.trf.xlu0
        %v1306 = vpop.trf.xlu0
        %1307 = vxpose.xlu0.b32.start [1/16] %v1208, 128
        %1308 = vxpose.xlu0.b32.cont [2/16] 0.0, 128
        %1309 = vxpose.xlu0.b32.cont [3/16] 0.0, 128
        %1310 = vxpose.xlu0.b32.cont [4/16] 0.0, 128
        %1311 = vxpose.xlu0.b32.cont [5/16] 0.0, 128
        %1312 = vxpose.xlu0.b32.cont [6/16] 0.0, 128
        %1313 = vxpose.xlu0.b32.cont [7/16] 0.0, 128
        %1314 = vxpose.xlu0.b32.cont [8/16] 0.0, 128
        %1315 = vxpose.xlu0.b32.cont [9/16] 0.0, 128
        %1316 = vxpose.xlu0.b32.cont [10/16] 0.0, 128
        %1317 = vxpose.xlu0.b32.cont [11/16] 0.0, 128
        %1318 = vxpose.xlu0.b32.cont [12/16] 0.0, 128
        %1319 = vxpose.xlu0.b32.cont [13/16] 0.0, 128
        %1320 = vxpose.xlu0.b32.cont [14/16] 0.0, 128
        %1321 = vxpose.xlu0.b32.cont [15/16] 0.0, 128
        %1322 = vxpose.xlu0.b32.end [16/16] 0.0, 128
        %v1323 = vpop.trf.xlu0
        %v1324 = vpop.trf.xlu0
        %v1325 = vpop.trf.xlu0
        %v1326 = vpop.trf.xlu0
        %v1327 = vpop.trf.xlu0
        %v1328 = vpop.trf.xlu0
        %v1329 = vpop.trf.xlu0
        %v1330 = vpop.trf.xlu0
        %v1331 = vpop.trf.xlu0
        %v1332 = vpop.trf.xlu0
        %v1333 = vpop.trf.xlu0
        %v1334 = vpop.trf.xlu0
        %v1335 = vpop.trf.xlu0
        %v1336 = vpop.trf.xlu0
        %v1337 = vpop.trf.xlu0
        %v1338 = vpop.trf.xlu0
        %v1339 = vcombine.low %v1227, %v1291
        %v1340 = vcombine.high %v1227, %v1291
        %v1342 = vunpack.c.l.s4 1983009808
        %v1343 = vunpack.c.0.s8 %v1342
        %v1344 = vlaneseq
        %v1345 = vshrl.u32 %v1344, 7
        %v1346 = vsub.s32 %v1343, %v1345
        %v1347 = vrot.slane %v1339, %v1346
        %v1349 = vunpack.c.l.s4 1983009808
        %v1350 = vunpack.c.0.s8 %v1349
        %v1351 = vlaneseq
        %v1352 = vshrl.u32 %v1351, 7
        %v1353 = vsub.s32 %v1350, %v1352
        %v1354 = vrot.slane %v1340, %v1353
        %v1355 = vcombine.low %v1259, %v1323
        %v1356 = vcombine.high %v1259, %v1323
        %v1358 = vunpack.c.l.s4 1983009808
        %v1359 = vunpack.c.0.s8 %v1358
        %v1360 = vlaneseq
        %v1361 = vshrl.u32 %v1360, 7
        %v1362 = vsub.s32 %v1359, %v1361
        %v1363 = vrot.slane %v1355, %v1362
        %v1365 = vunpack.c.l.s4 1983009808
        %v1366 = vunpack.c.0.s8 %v1365
        %v1367 = vlaneseq
        %v1368 = vshrl.u32 %v1367, 7
        %v1369 = vsub.s32 %v1366, %v1368
        %v1370 = vrot.slane %v1356, %v1369
        %v1371 = vcombine.low %v1347, %v1363
        %v1372 = vcombine.high %v1347, %v1363
        %v1374 = vunpack.c.l.s4 1934713408
        %v1375 = vunpack.c.0.s8 %v1374
        %v1376 = vlaneseq
        %v1377 = vshrl.u32 %v1376, 7
        %v1378 = vsub.s32 %v1375, %v1377
        %v1379 = vrot.slane %v1371, %v1378
        %v1381 = vunpack.c.l.s4 1934713408
        %v1382 = vunpack.c.0.s8 %v1381
        %v1383 = vlaneseq
        %v1384 = vshrl.u32 %v1383, 7
        %v1385 = vsub.s32 %v1382, %v1384
        %v1386 = vrot.slane %v1372, %v1385
        %v1387 = vcombine.low %v1354, %v1370
        %v1388 = vcombine.high %v1354, %v1370
        %v1390 = vunpack.c.l.s4 1934713408
        %v1391 = vunpack.c.0.s8 %v1390
        %v1392 = vlaneseq
        %v1393 = vshrl.u32 %v1392, 7
        %v1394 = vsub.s32 %v1391, %v1393
        %v1395 = vrot.slane %v1387, %v1394
        %v1397 = vunpack.c.l.s4 1934713408
        %v1398 = vunpack.c.0.s8 %v1397
        %v1399 = vlaneseq
        %v1400 = vshrl.u32 %v1399, 7
        %v1401 = vsub.s32 %v1398, %v1400
        %v1402 = vrot.slane %v1388, %v1401
        %v1403 = vcombine.high %v1379, 0.0
        %v1404 = vcombine.high %v1386, 0.0
        %v1405 = vcombine.high %v1395, 0.0
        %v1406 = vcombine.high %v1402, 0.0
        %v1407 = vcombine.low %v1379, %v1386
        %v1409 = vunpack.c.l.s4 1983009808
        %v1410 = vunpack.c.0.s8 %v1409
        %v1411 = vlaneseq
        %v1412 = vshrl.u32 %v1411, 7
        %v1413 = vsub.s32 %v1410, %v1412
        %v1414 = vrot.slane %v1407, %v1413
        %v1415 = vcombine.low %v1403, %v1404
        %v1417 = vunpack.c.l.s4 1983009808
        %v1418 = vunpack.c.0.s8 %v1417
        %v1419 = vlaneseq
        %v1420 = vshrl.u32 %v1419, 7
        %v1421 = vsub.s32 %v1418, %v1420
        %v1422 = vrot.slane %v1415, %v1421
        %v1423 = vcombine.low %v1395, %v1402
        %v1425 = vunpack.c.l.s4 1983009808
        %v1426 = vunpack.c.0.s8 %v1425
        %v1427 = vlaneseq
        %v1428 = vshrl.u32 %v1427, 7
        %v1429 = vsub.s32 %v1426, %v1428
        %v1430 = vrot.slane %v1423, %v1429
        %v1431 = vcombine.low %v1405, %v1406
        %v1433 = vunpack.c.l.s4 1983009808
        %v1434 = vunpack.c.0.s8 %v1433
        %v1435 = vlaneseq
        %v1436 = vshrl.u32 %v1435, 7
        %v1437 = vsub.s32 %v1434, %v1436
        %v1438 = vrot.slane %v1431, %v1437
        %v1439 = vcombine.low %v1414, %v1422
        %v1440 = vcombine.high %v1414, %v1422
        %v1442 = vunpack.c.l.s4 1934713408
        %v1443 = vunpack.c.0.s8 %v1442
        %v1444 = vlaneseq
        %v1445 = vshrl.u32 %v1444, 7
        %v1446 = vsub.s32 %v1443, %v1445
        %v1447 = vrot.slane %v1439, %v1446
        %v1449 = vunpack.c.l.s4 1934713408
        %v1450 = vunpack.c.0.s8 %v1449
        %v1451 = vlaneseq
        %v1452 = vshrl.u32 %v1451, 7
        %v1453 = vsub.s32 %v1450, %v1452
        %v1454 = vrot.slane %v1440, %v1453
        %v1455 = vcombine.low %v1430, %v1438
        %v1456 = vcombine.high %v1430, %v1438
        %v1458 = vunpack.c.l.s4 1934713408
        %v1459 = vunpack.c.0.s8 %v1458
        %v1460 = vlaneseq
        %v1461 = vshrl.u32 %v1460, 7
        %v1462 = vsub.s32 %v1459, %v1461
        %v1463 = vrot.slane %v1455, %v1462
        %v1465 = vunpack.c.l.s4 1934713408
        %v1466 = vunpack.c.0.s8 %v1465
        %v1467 = vlaneseq
        %v1468 = vshrl.u32 %v1467, 7
        %v1469 = vsub.s32 %v1466, %v1468
        %v1470 = vrot.slane %v1456, %v1469
        %v1471 = vcombine.low %v1447, %v1463
        %v1472 = vcombine.high %v1447, %v1463
        %v1473 = vcombine.low %v1454, %v1470
        %v1474 = vcombine.high %v1454, %v1470
        %1476 = vrot.lane.b32.xlu0 %v1472, 8
        %v1477 = vpop.permute.xlu0 %1476
        %1480 = vrot.lane.b32.xlu0 %v1473, 16
        %v1481 = vpop.permute.xlu0 %1480
        %1484 = vrot.lane.b32.xlu0 %v1474, 24
        %v1485 = vpop.permute.xlu0 %1484
        %v1487 = vsel %vm434, %v1471, %v1477
        %vm1488 = vcmask 130048
        %v1489 = vsel %vm1488, %v1487, %v1481
        %vm1490 = vcmask 195584
        %v1491 = vsel %vm1490, %v1489, %v1485
        %1492 = vst.msk [vmem:[%s200] sm:$0xff] %vm213, %v1491
        %s1493 = sand.u32 %s97, 1
        %s1494 = scalar_lea.sflag [#allocation4], %s1493
        %s1495 = sand.u32 %s97, 1
        %s1496 = smul.addr %s1495, 8
        %s1497 = scalar_lea.vmem [#allocation7], %s1496
        // Predicated region
        $region41: #{tpu_custom_call.1} parent=31 // pred_check
          %p1498 = pneg %p107
        $region42: #{tpu_custom_call.1} parent=31 // pred_check_branch
          %1500 = sbr.rel (%p1498) target = $region44
        $region43: #{tpu_custom_call.1} parent=31 // pred_region
          %s1502 = ssub.s32 128, 128
          %1503 = vsyncadd %s1494, %s1502
          %s1504 = smul.addr %s21, 128
          %s1505 = scalar_lea.hbm %s3, %s1504
          %s1507 = sshll.u32 %s1497, 4
          %s1508 = int_to_ptr.vmem [resolvable:$true] %s1507
          %1510 = dma.vmem_to_hbm [thread:$0]  %s1508, 128, %s1505, %s1494
        $region44: #{tpu_custom_call.1} parent=31 // pred_fallthru
          _
      $region32: #{tpu_custom_call.1} parent=5 // pred_fallthru
        _
      %p1511 = scmp.le.s32.totalorder 2, %s16
      // Predicated region
      $region45: #{tpu_custom_call.1} parent=5 // pred_check
        %p1512 = pneg %p1511
      $region46: #{tpu_custom_call.1} parent=5 // pred_check_branch
        %1514 = sbr.rel (%p1512) target = $region48
      $region47: #{tpu_custom_call.1} parent=5 // pred_region
        %s1515 = ssub.s32 %s16, 2
        // Predicated region
        $region49: #{tpu_custom_call.1} parent=47 // pred_check
          %p1516 = pneg %p113
        $region50: #{tpu_custom_call.1} parent=47 // pred_check_branch
          %1518 = sbr.rel (%p1516) target = $region52
        $region51: #{tpu_custom_call.1} parent=47 // pred_region
          %s1519 = sand.u32 %s98, 1
          %s1520 = scalar_lea.sflag [#allocation4], %s1519
          %s1521 = sand.u32 %s98, 1
          %s1522 = smul.addr %s1521, 8
          %s1523 = scalar_lea.vmem [#allocation7], %s1522
          %1524 = dma.done %s1520, 128
        $region52: #{tpu_custom_call.1} parent=47 // pred_fallthru
          _
      $region48: #{tpu_custom_call.1} parent=5 // pred_fallthru
        _
    $region6: #{tpu_custom_call.1} parent=1 // loop_footer
      %s20 = sadd.s32 1, %s16
    $region7: #{tpu_custom_call.1} parent=1 // loop_footer_branch
      %15 = sbr.rel target = $region3
    $region8: #{tpu_custom_call.1} parent=1 // loop_exit
      _
    %1525 = vsyncpa [#allocation3], 1
    %s1526 = scalar_lea.sflag [#allocation3], 1
    %1527 = vsyncpa %s1526, 1
    %1528 = vsyncpa [#allocation6], 1
    %1529 = vsyncpa [#allocation4], 1
    %s1530 = scalar_lea.sflag [#allocation4], 1
    %1531 = vsyncpa %s1530, 1

</llo_original>
